<compile_context>
chip_gen: v7x
topology: tpu7x:2x2x1
jax: 0.10.0
libtpu: 0.0.40
codegen_flags: <defaults>
</compile_context>

<pallas_src>
import functools
import math

import numpy as np
import jax
import jax.numpy as jnp
from jax.experimental import pallas as pl
from jax.experimental.pallas import tpu as pltpu  # noqa: F401  (TPU backend)

# ---- model hyper-parameters (small, consistent with the module) ------------
D_MODEL = 32
NHEAD = 4
NUM_LAYERS = 2
DFF = 64
HEAD_DIM = D_MODEL // NHEAD
LN_EPS = 1e-5
LANES = 128
NEG_INF = -1e30
V_LAYER_ROWS = 16  # per-layer vector rows in vbuf (10 used, padded to 16)


def _round_up(x, m):
    return (x + m - 1) // m * m


def _w_layer_rows(d, dff):
    # per-layer rows in wbuf: Wq, Wk, Wv, Wo (d rows each), W1 (d), W2 (dff)
    return 5 * d + dff


def _v_global_rows(hsb):
    # additive batch mask (hsb rows) + head mask (hsb rows) + final LN (2 rows)
    return _round_up(2 * hsb + 2, 8)


def _layernorm(x, gamma, beta):
    # PyTorch nn.LayerNorm: biased variance, eps=1e-5
    mu = jnp.mean(x, axis=-1, keepdims=True)
    var = jnp.mean((x - mu) ** 2, axis=-1, keepdims=True)
    return (x - mu) * jax.lax.rsqrt(var + LN_EPS) * gamma + beta


# ---------------------------------------------------------------------------
# Fused kernel: NUM_LAYERS x TransformerEncoderLayer + final LayerNorm.
# Activations are a flat (S*B, D) slab with rows ordered (s, b) -> b = row % B.
# ---------------------------------------------------------------------------
def encoder_kernel(x_ref, w_ref, v_ref, o_ref, *, nhead, dff, num_layers):
    SB, D = x_ref.shape
    HSB = nhead * SB
    WL = _w_layer_rows(D, dff)
    VG = _v_global_rows(HSB)

    x = x_ref[...]                                      # (SB, D) f32

    # Constants shared by all layers (loaded once, hoisted above the loop).
    addmask = v_ref[0:HSB, 0:SB]                        # additive 0 / -1e30
    headmask = v_ref[HSB:2 * HSB, 0:D]                  # 0 / 1 per head block

    def mx(a, b):
        # single-pass bf16 MXU matmul, f32 accumulation
        return jnp.dot(a.astype(jnp.bfloat16), b.astype(jnp.bfloat16),
                       preferred_element_type=jnp.float32)

    for layer in range(num_layers):                     # static unroll (L=2)
        wb = layer * WL
        vb = VG + layer * V_LAYER_ROWS

        wq = w_ref[wb:wb + D, 0:D]                      # pre-scaled by 1/sqrt(hd)
        wk = w_ref[wb + D:wb + 2 * D, 0:D]
        wv = w_ref[wb + 2 * D:wb + 3 * D, 0:D]
        wo = w_ref[wb + 3 * D:wb + 4 * D, 0:D]
        w1 = w_ref[wb + 4 * D:wb + 5 * D, 0:dff]
        w2 = w_ref[wb + 5 * D:wb + 5 * D + dff, 0:D]

        bq = v_ref[vb + 0:vb + 1, 0:D]                  # pre-scaled by 1/sqrt(hd)
        bk = v_ref[vb + 1:vb + 2, 0:D]
        bv = v_ref[vb + 2:vb + 3, 0:D]
        bo = v_ref[vb + 3:vb + 4, 0:D]
        b1 = v_ref[vb + 4:vb + 5, 0:dff]
        b2 = v_ref[vb + 5:vb + 6, 0:D]
        g1 = v_ref[vb + 6:vb + 7, 0:D]
        be1 = v_ref[vb + 7:vb + 8, 0:D]
        g2 = v_ref[vb + 8:vb + 9, 0:D]
        be2 = v_ref[vb + 9:vb + 10, 0:D]

        # ---- multi-head self-attention: all heads in ONE score / PV matmul --
        q = mx(x, wq) + bq                              # (SB, D)  (scaled q)
        k = mx(x, wk) + bk                              # (SB, D)
        v = mx(x, wv) + bv                              # (SB, D)

        # Head-stacked queries: sublane row-block h keeps only head-h lanes.
        qp = jnp.concatenate([q] * nhead, axis=0) * headmask     # (HSB, D)

        sc = mx(qp, k.T) + addmask                      # (HSB, SB) scores
        sc = sc - jnp.max(sc, axis=-1, keepdims=True)
        p = jnp.exp(sc)
        p = p * pl.reciprocal(jnp.sum(p, axis=-1, keepdims=True), approx=True)

        of = mx(p, v) * headmask                        # (HSB, D) per-head out
        oc = of[0:SB]                                   # reassemble head concat
        for h in range(1, nhead):
            oc = oc + of[h * SB:(h + 1) * SB]           # (SB, D)
        attn = mx(oc, wo) + bo                          # out-projection

        # residual + LayerNorm1   (dropout == identity in eval)
        x = _layernorm(x + attn, g1, be1)

        # ---- feed-forward ----------------------------------------------------
        h1 = jnp.maximum(mx(x, w1) + b1, 0.0)
        h2 = mx(h1, w2) + b2

        # residual + LayerNorm2
        x = _layernorm(x + h2, g2, be2)

    # ---- final LayerNorm of the Encoder --------------------------------------
    fg = v_ref[2 * HSB:2 * HSB + 1, 0:D]
    fb = v_ref[2 * HSB + 1:2 * HSB + 2, 0:D]
    o_ref[...] = _layernorm(x, fg, fb)


def _full_spec(shape):
    zeros = (0,) * len(shape)
    return pl.BlockSpec(shape, lambda: zeros)


# ---------------------------------------------------------------------------
# Full Encoder forward:  src (S, B, D)  ->  out (S, B, D)   [PyTorch layout]
# Single pallas_call; the (S,B,D) <-> (S*B,D) reshapes are contiguous (free).
# ---------------------------------------------------------------------------
def encoder_forward(src_sbd, wbuf, vbuf):
    S, B, D = src_sbd.shape
    x2 = src_sbd.astype(jnp.float32).reshape(S * B, D)
    out2 = pl.pallas_call(
        functools.partial(encoder_kernel, nhead=NHEAD, dff=DFF,
                          num_layers=NUM_LAYERS),
        out_shape=jax.ShapeDtypeStruct((S * B, D), jnp.float32),
        in_specs=[_full_spec(x2.shape), _full_spec(wbuf.shape),
                  _full_spec(vbuf.shape)],
        out_specs=_full_spec((S * B, D)),
    )(x2, wbuf, vbuf)
    return out2.reshape(S, B, D)


# ---------------------------------------------------------------------------
# Parameter construction (deterministic, synthetic) — "raw" layout (x @ W).
# TODO(synk): real PyTorch in_proj_weight (3D,D) / nn.Linear weights (out,in)
#             would need transposing before packing; synthetic layout assumed.
# ---------------------------------------------------------------------------
def init_raw_params(key, d_model=D_MODEL, dff=DFF, num_layers=NUM_LAYERS):
    layers = []
    for _ in range(num_layers):
        keys = jax.random.split(key, 9)
        key = keys[0]
        s = 0.05
        layers.append(dict(
            wq=s * jax.random.normal(keys[1], (d_model, d_model), jnp.float32),
            wk=s * jax.random.normal(keys[2], (d_model, d_model), jnp.float32),
            wv=s * jax.random.normal(keys[3], (d_model, d_model), jnp.float32),
            wo=s * jax.random.normal(keys[4], (d_model, d_model), jnp.float32),
            w1=s * jax.random.normal(keys[5], (d_model, dff), jnp.float32),
            w2=s * jax.random.normal(keys[6], (dff, d_model), jnp.float32),
            bq=s * jax.random.normal(keys[7], (d_model,), jnp.float32),
            b1=s * jax.random.normal(keys[8], (dff,), jnp.float32),
            bk=jnp.zeros((d_model,), jnp.float32),
            bv=jnp.zeros((d_model,), jnp.float32),
            bo=jnp.zeros((d_model,), jnp.float32),
            b2=jnp.zeros((d_model,), jnp.float32),
            g1=jnp.ones((d_model,), jnp.float32),
            be1=jnp.zeros((d_model,), jnp.float32),
            g2=jnp.ones((d_model,), jnp.float32),
            be2=jnp.zeros((d_model,), jnp.float32),
        ))
    final_ln = (jnp.ones((d_model,), jnp.float32),
                jnp.zeros((d_model,), jnp.float32))
    return layers, final_ln


# ---------------------------------------------------------------------------
# Pack raw params into the two lane-dense buffers consumed by the kernel.
#   wbuf (bf16, [L*(5D+DFF), 128]): Wq*1/sqrt(hd), Wk, Wv, Wo, W1, W2 per layer
#   vbuf (f32,  [VG + 16*L, 128]) : additive batch mask, head mask, final LN,
#                                   then per-layer bias / LN vectors
# ---------------------------------------------------------------------------
def pack_params(layers, final_ln, S, B, d_model=D_MODEL, nhead=NHEAD, dff=DFF):
    num_layers = len(layers)
    hd = d_model // nhead
    sb = S * B
    hsb = nhead * sb
    scale = 1.0 / math.sqrt(hd)

    WL = _w_layer_rows(d_model, dff)
    wbuf = np.zeros((num_layers * WL, LANES), np.float32)
    for l, p in enumerate(layers):
        b = l * WL
        wbuf[b:b + d_model, :d_model] = np.asarray(p['wq']) * scale
        wbuf[b + d_model:b + 2 * d_model, :d_model] = np.asarray(p['wk'])
        wbuf[b + 2 * d_model:b + 3 * d_model, :d_model] = np.asarray(p['wv'])
        wbuf[b + 3 * d_model:b + 4 * d_model, :d_model] = np.asarray(p['wo'])
        wbuf[b + 4 * d_model:b + 5 * d_model, :dff] = np.asarray(p['w1'])
        wbuf[b + 5 * d_model:b + 5 * d_model + dff, :d_model] = np.asarray(p['w2'])

    VG = _v_global_rows(hsb)
    vbuf = np.zeros((VG + num_layers * V_LAYER_ROWS, LANES), np.float32)
    rows = np.arange(hsb)[:, None]
    cols = np.arange(sb)[None, :]
    # additive same-batch mask: x rows are (s-major, b-minor) -> batch = row % B
    vbuf[0:hsb, 0:sb] = np.where((rows % B) == (cols % B), 0.0, NEG_INF)
    # head mask: sublane row-block h keeps feature lanes of head h
    dcol = np.arange(d_model)[None, :]
    vbuf[hsb:2 * hsb, 0:d_model] = ((rows // sb) == (dcol // hd)).astype(np.float32)
    vbuf[2 * hsb, :d_model] = np.asarray(final_ln[0])
    vbuf[2 * hsb + 1, :d_model] = np.asarray(final_ln[1])
    for l, p in enumerate(layers):
        b = VG + l * V_LAYER_ROWS
        vbuf[b + 0, :d_model] = np.asarray(p['bq']) * scale
        vbuf[b + 1, :d_model] = np.asarray(p['bk'])
        vbuf[b + 2, :d_model] = np.asarray(p['bv'])
        vbuf[b + 3, :d_model] = np.asarray(p['bo'])
        vbuf[b + 4, :dff] = np.asarray(p['b1'])
        vbuf[b + 5, :d_model] = np.asarray(p['b2'])
        vbuf[b + 6, :d_model] = np.asarray(p['g1'])
        vbuf[b + 7, :d_model] = np.asarray(p['be1'])
        vbuf[b + 8, :d_model] = np.asarray(p['g2'])
        vbuf[b + 9, :d_model] = np.asarray(p['be2'])

    return jnp.asarray(wbuf, jnp.bfloat16), jnp.asarray(vbuf, jnp.float32)


# ---------------------------------------------------------------------------
# Pure-JAX reference (mirrors the PyTorch module, eval-mode dropout),
# consuming the RAW (unscaled, unpacked) parameters.
# ---------------------------------------------------------------------------
def encoder_reference(src_sbd, layers, final_ln, nhead=NHEAD):
    S, B, D = src_sbd.shape
    hd = D // nhead
    x = src_sbd.astype(jnp.float32)
    for p in layers:
        q = jnp.einsum('sbd,de->sbe', x, p['wq']) + p['bq']
        k = jnp.einsum('sbd,de->sbe', x, p['wk']) + p['bk']
        v = jnp.einsum('sbd,de->sbe', x, p['wv']) + p['bv']
        qh = q.reshape(S, B, nhead, hd)
        kh = k.reshape(S, B, nhead, hd)
        vh = v.reshape(S, B, nhead, hd)
        sc = jnp.einsum('sbhd,tbhd->bhst', qh, kh) / jnp.sqrt(float(hd))
        pr = jax.nn.softmax(sc, axis=-1)
        o = jnp.einsum('bhst,tbhd->sbhd', pr, vh).reshape(S, B, D)
        attn = jnp.einsum('sbd,de->sbe', o, p['wo']) + p['bo']
        x = _layernorm(x + attn, p['g1'], p['be1'])
        h1 = jax.nn.relu(jnp.einsum('sbd,df->sbf', x, p['w1']) + p['b1'])
        h2 = jnp.einsum('sbf,fd->sbd', h1, p['w2']) + p['b2']
        x = _layernorm(x + h2, p['g2'], p['be2'])
    return _layernorm(x, final_ln[0], final_ln[1])


if __name__ == "__main__":
    # TODO(synk): nn.Dropout is treated as identity (eval/inference semantics);
    # stochastic train-mode dropout is not implemented.
    S, B = 8, 2
    key = jax.random.PRNGKey(0)
    k_x, k_p = jax.random.split(key)
    src = jax.random.normal(k_x, (S, B, D_MODEL), jnp.float32)  # (seq, batch, d)

    layers, final_ln = init_raw_params(k_p)
    wbuf, vbuf = pack_params(layers, final_ln, S, B)

    fwd = jax.jit(encoder_forward)
    out = fwd(src, wbuf, vbuf)
    jax.block_until_ready(out)

    assert out.shape == (S, B, D_MODEL)
    assert out.dtype == jnp.float32
    assert bool(jnp.all(jnp.isfinite(out)))

    ref = encoder_reference(src, layers, final_ln)
    max_err = float(jnp.max(jnp.abs(out - ref)))
    assert bool(jnp.allclose(out, ref, atol=2e-2, rtol=2e-2)), max_err

    print("KERNEL_OK")
</pallas_src>

<mosaic_0001>
module attributes {stable_mosaic.version = 11 : i64} {
  func.func @encoder_kernel(%arg0: memref<16x32xf32, #tpu.memory_space<vmem>>, %arg1: memref<448x128xbf16, #tpu.memory_space<vmem>>, %arg2: memref<168x128xf32, #tpu.memory_space<vmem>>, %arg3: memref<16x32xf32, #tpu.memory_space<vmem>>) attributes {dimension_semantics = [], scalar_prefetch = 0 : i64, scratch_operands = 0 : i64, tpu.core_type = #tpu.core_type<tc>} {
    %c0 = arith.constant 0 : index
    %c0_0 = arith.constant 0 : index
    %0 = vector.load %arg0[%c0, %c0_0] : memref<16x32xf32, #tpu.memory_space<vmem>>, vector<16x32xf32>
    %c0_1 = arith.constant 0 : index
    %c0_2 = arith.constant 0 : index
    %1 = vector.load %arg2[%c0_1, %c0_2] : memref<168x128xf32, #tpu.memory_space<vmem>>, vector<64x16xf32>
    %c64 = arith.constant 64 : index
    %c0_3 = arith.constant 0 : index
    %2 = vector.load %arg2[%c64, %c0_3] : memref<168x128xf32, #tpu.memory_space<vmem>>, vector<64x32xf32>
    %c0_4 = arith.constant 0 : index
    %c0_5 = arith.constant 0 : index
    %3 = vector.load %arg1[%c0_4, %c0_5] : memref<448x128xbf16, #tpu.memory_space<vmem>>, vector<32x32xbf16>
    %c32 = arith.constant 32 : index
    %c0_6 = arith.constant 0 : index
    %4 = vector.load %arg1[%c32, %c0_6] : memref<448x128xbf16, #tpu.memory_space<vmem>>, vector<32x32xbf16>
    %c64_7 = arith.constant 64 : index
    %c0_8 = arith.constant 0 : index
    %5 = vector.load %arg1[%c64_7, %c0_8] : memref<448x128xbf16, #tpu.memory_space<vmem>>, vector<32x32xbf16>
    %c96 = arith.constant 96 : index
    %c0_9 = arith.constant 0 : index
    %6 = vector.load %arg1[%c96, %c0_9] : memref<448x128xbf16, #tpu.memory_space<vmem>>, vector<32x32xbf16>
    %c128 = arith.constant 128 : index
    %c0_10 = arith.constant 0 : index
    %7 = vector.load %arg1[%c128, %c0_10] : memref<448x128xbf16, #tpu.memory_space<vmem>>, vector<32x64xbf16>
    %c160 = arith.constant 160 : index
    %c0_11 = arith.constant 0 : index
    %8 = vector.load %arg1[%c160, %c0_11] : memref<448x128xbf16, #tpu.memory_space<vmem>>, vector<64x32xbf16>
    %c136 = arith.constant 136 : index
    %c0_12 = arith.constant 0 : index
    %9 = vector.load %arg2[%c136, %c0_12] : memref<168x128xf32, #tpu.memory_space<vmem>>, vector<1x32xf32>
    %c137 = arith.constant 137 : index
    %c0_13 = arith.constant 0 : index
    %10 = vector.load %arg2[%c137, %c0_13] : memref<168x128xf32, #tpu.memory_space<vmem>>, vector<1x32xf32>
    %c138 = arith.constant 138 : index
    %c0_14 = arith.constant 0 : index
    %11 = vector.load %arg2[%c138, %c0_14] : memref<168x128xf32, #tpu.memory_space<vmem>>, vector<1x32xf32>
    %c139 = arith.constant 139 : index
    %c0_15 = arith.constant 0 : index
    %12 = vector.load %arg2[%c139, %c0_15] : memref<168x128xf32, #tpu.memory_space<vmem>>, vector<1x32xf32>
    %c140 = arith.constant 140 : index
    %c0_16 = arith.constant 0 : index
    %13 = vector.load %arg2[%c140, %c0_16] : memref<168x128xf32, #tpu.memory_space<vmem>>, vector<1x64xf32>
    %c141 = arith.constant 141 : index
    %c0_17 = arith.constant 0 : index
    %14 = vector.load %arg2[%c141, %c0_17] : memref<168x128xf32, #tpu.memory_space<vmem>>, vector<1x32xf32>
    %c142 = arith.constant 142 : index
    %c0_18 = arith.constant 0 : index
    %15 = vector.load %arg2[%c142, %c0_18] : memref<168x128xf32, #tpu.memory_space<vmem>>, vector<1x32xf32>
    %c143 = arith.constant 143 : index
    %c0_19 = arith.constant 0 : index
    %16 = vector.load %arg2[%c143, %c0_19] : memref<168x128xf32, #tpu.memory_space<vmem>>, vector<1x32xf32>
    %c144 = arith.constant 144 : index
    %c0_20 = arith.constant 0 : index
    %17 = vector.load %arg2[%c144, %c0_20] : memref<168x128xf32, #tpu.memory_space<vmem>>, vector<1x32xf32>
    %c145 = arith.constant 145 : index
    %c0_21 = arith.constant 0 : index
    %18 = vector.load %arg2[%c145, %c0_21] : memref<168x128xf32, #tpu.memory_space<vmem>>, vector<1x32xf32>
    %19 = arith.truncf %0 : vector<16x32xf32> to vector<16x32xbf16>
    %cst = arith.constant dense<0.000000e+00> : vector<16x32xf32>
    %20 = tpu.matmul %19, %3, %cst {dimension_numbers = #tpu.dot_dimension_numbers<[1], [0], [0], [1], [0, 0, 1, 1], [], []>} : vector<16x32xbf16>, vector<32x32xbf16>, vector<16x32xf32> -> vector<16x32xf32>
    %21 = vector.broadcast %9 : vector<1x32xf32> to vector<16x32xf32>
    %22 = arith.addf %20, %21 : vector<16x32xf32>
    %23 = arith.truncf %0 : vector<16x32xf32> to vector<16x32xbf16>
    %cst_22 = arith.constant dense<0.000000e+00> : vector<16x32xf32>
    %24 = tpu.matmul %23, %4, %cst_22 {dimension_numbers = #tpu.dot_dimension_numbers<[1], [0], [0], [1], [0, 0, 1, 1], [], []>} : vector<16x32xbf16>, vector<32x32xbf16>, vector<16x32xf32> -> vector<16x32xf32>
    %25 = vector.broadcast %10 : vector<1x32xf32> to vector<16x32xf32>
    %26 = arith.addf %24, %25 : vector<16x32xf32>
    %27 = arith.truncf %0 : vector<16x32xf32> to vector<16x32xbf16>
    %cst_23 = arith.constant dense<0.000000e+00> : vector<16x32xf32>
    %28 = tpu.matmul %27, %5, %cst_23 {dimension_numbers = #tpu.dot_dimension_numbers<[1], [0], [0], [1], [0, 0, 1, 1], [], []>} : vector<16x32xbf16>, vector<32x32xbf16>, vector<16x32xf32> -> vector<16x32xf32>
    %29 = vector.broadcast %11 : vector<1x32xf32> to vector<16x32xf32>
    %30 = arith.addf %28, %29 : vector<16x32xf32>
    %31 = tpu.concatenate %22, %22, %22, %22 in 0 : vector<16x32xf32>, vector<16x32xf32>, vector<16x32xf32>, vector<16x32xf32> -> vector<64x32xf32>
    %32 = arith.mulf %31, %2 : vector<64x32xf32>
    %33 = tpu.transpose %26, [1, 0] : vector<16x32xf32> -> vector<32x16xf32>
    %34 = arith.truncf %32 : vector<64x32xf32> to vector<64x32xbf16>
    %35 = arith.truncf %33 : vector<32x16xf32> to vector<32x16xbf16>
    %cst_24 = arith.constant dense<0.000000e+00> : vector<64x16xf32>
    %36 = tpu.matmul %34, %35, %cst_24 {dimension_numbers = #tpu.dot_dimension_numbers<[1], [0], [0], [1], [0, 0, 1, 1], [], []>} : vector<64x32xbf16>, vector<32x16xbf16>, vector<64x16xf32> -> vector<64x16xf32>
    %37 = arith.addf %36, %1 : vector<64x16xf32>
    %cst_25 = arith.constant dense<0xFF800000> : vector<64xf32>
    %38 = vector.multi_reduction <maximumf>, %37, %cst_25 [1] : vector<64x16xf32> to vector<64xf32>
    %39 = vector.shape_cast %38 : vector<64xf32> to vector<64x1xf32>
    %40 = vector.broadcast %39 : vector<64x1xf32> to vector<64x16xf32>
    %41 = arith.subf %37, %40 : vector<64x16xf32>
    %42 = math.exp %41 : vector<64x16xf32>
    %cst_26 = arith.constant dense<0.000000e+00> : vector<64xf32>
    %43 = vector.multi_reduction <add>, %42, %cst_26 [1] : vector<64x16xf32> to vector<64xf32>
    %44 = vector.shape_cast %43 : vector<64xf32> to vector<64x1xf32>
    %45 = tpu.reciprocal %44 {approx = true} : vector<64x1xf32> -> vector<64x1xf32>
    %46 = vector.broadcast %45 : vector<64x1xf32> to vector<64x16xf32>
    %47 = arith.mulf %42, %46 : vector<64x16xf32>
    %48 = arith.truncf %47 : vector<64x16xf32> to vector<64x16xbf16>
    %49 = arith.truncf %30 : vector<16x32xf32> to vector<16x32xbf16>
    %cst_27 = arith.constant dense<0.000000e+00> : vector<64x32xf32>
    %50 = tpu.matmul %48, %49, %cst_27 {dimension_numbers = #tpu.dot_dimension_numbers<[1], [0], [0], [1], [0, 0, 1, 1], [], []>} : vector<64x16xbf16>, vector<16x32xbf16>, vector<64x32xf32> -> vector<64x32xf32>
    %51 = arith.mulf %50, %2 : vector<64x32xf32>
    %52 = vector.extract_strided_slice %51 {offsets = [0, 0], sizes = [16, 32], strides = [1, 1]} : vector<64x32xf32> to vector<16x32xf32>
    %53 = vector.extract_strided_slice %51 {offsets = [16, 0], sizes = [16, 32], strides = [1, 1]} : vector<64x32xf32> to vector<16x32xf32>
    %54 = arith.addf %52, %53 : vector<16x32xf32>
    %55 = vector.extract_strided_slice %51 {offsets = [32, 0], sizes = [16, 32], strides = [1, 1]} : vector<64x32xf32> to vector<16x32xf32>
    %56 = arith.addf %54, %55 : vector<16x32xf32>
    %57 = vector.extract_strided_slice %51 {offsets = [48, 0], sizes = [16, 32], strides = [1, 1]} : vector<64x32xf32> to vector<16x32xf32>
    %58 = arith.addf %56, %57 : vector<16x32xf32>
    %59 = arith.truncf %58 : vector<16x32xf32> to vector<16x32xbf16>
    %cst_28 = arith.constant dense<0.000000e+00> : vector<16x32xf32>
    %60 = tpu.matmul %59, %6, %cst_28 {dimension_numbers = #tpu.dot_dimension_numbers<[1], [0], [0], [1], [0, 0, 1, 1], [], []>} : vector<16x32xbf16>, vector<32x32xbf16>, vector<16x32xf32> -> vector<16x32xf32>
    %61 = vector.broadcast %12 : vector<1x32xf32> to vector<16x32xf32>
    %62 = arith.addf %60, %61 : vector<16x32xf32>
    %63 = arith.addf %0, %62 : vector<16x32xf32>
    %cst_29 = arith.constant dense<0.000000e+00> : vector<16xf32>
    %64 = vector.multi_reduction <add>, %63, %cst_29 [1] : vector<16x32xf32> to vector<16xf32>
    %65 = vector.shape_cast %64 : vector<16xf32> to vector<16x1xf32>
    %cst_30 = arith.constant 3.200000e+01 : f32
    %66 = vector.broadcast %cst_30 : f32 to vector<16x1xf32>
    %67 = arith.divf %65, %66 : vector<16x1xf32>
    %68 = vector.broadcast %67 : vector<16x1xf32> to vector<16x32xf32>
    %69 = arith.subf %63, %68 : vector<16x32xf32>
    %70 = arith.mulf %69, %69 : vector<16x32xf32>
    %cst_31 = arith.constant dense<0.000000e+00> : vector<16xf32>
    %71 = vector.multi_reduction <add>, %70, %cst_31 [1] : vector<16x32xf32> to vector<16xf32>
    %72 = vector.shape_cast %71 : vector<16xf32> to vector<16x1xf32>
    %cst_32 = arith.constant 3.200000e+01 : f32
    %73 = vector.broadcast %cst_32 : f32 to vector<16x1xf32>
    %74 = arith.divf %72, %73 : vector<16x1xf32>
    %75 = vector.broadcast %67 : vector<16x1xf32> to vector<16x32xf32>
    %76 = arith.subf %63, %75 : vector<16x32xf32>
    %cst_33 = arith.constant 9.99999974E-6 : f32
    %77 = vector.broadcast %cst_33 : f32 to vector<16x1xf32>
    %78 = arith.addf %74, %77 : vector<16x1xf32>
    %79 = math.rsqrt %78 : vector<16x1xf32>
    %80 = vector.broadcast %79 : vector<16x1xf32> to vector<16x32xf32>
    %81 = arith.mulf %76, %80 : vector<16x32xf32>
    %82 = vector.broadcast %15 : vector<1x32xf32> to vector<16x32xf32>
    %83 = arith.mulf %81, %82 : vector<16x32xf32>
    %84 = vector.broadcast %16 : vector<1x32xf32> to vector<16x32xf32>
    %85 = arith.addf %83, %84 : vector<16x32xf32>
    %86 = arith.truncf %85 : vector<16x32xf32> to vector<16x32xbf16>
    %cst_34 = arith.constant dense<0.000000e+00> : vector<16x64xf32>
    %87 = tpu.matmul %86, %7, %cst_34 {dimension_numbers = #tpu.dot_dimension_numbers<[1], [0], [0], [1], [0, 0, 1, 1], [], []>} : vector<16x32xbf16>, vector<32x64xbf16>, vector<16x64xf32> -> vector<16x64xf32>
    %88 = vector.broadcast %13 : vector<1x64xf32> to vector<16x64xf32>
    %89 = arith.addf %87, %88 : vector<16x64xf32>
    %cst_35 = arith.constant 0.000000e+00 : f32
    %90 = vector.broadcast %cst_35 : f32 to vector<16x64xf32>
    %91 = arith.maximumf %89, %90 : vector<16x64xf32>
    %92 = arith.truncf %91 : vector<16x64xf32> to vector<16x64xbf16>
    %cst_36 = arith.constant dense<0.000000e+00> : vector<16x32xf32>
    %93 = tpu.matmul %92, %8, %cst_36 {dimension_numbers = #tpu.dot_dimension_numbers<[1], [0], [0], [1], [0, 0, 1, 1], [], []>} : vector<16x64xbf16>, vector<64x32xbf16>, vector<16x32xf32> -> vector<16x32xf32>
    %94 = vector.broadcast %14 : vector<1x32xf32> to vector<16x32xf32>
    %95 = arith.addf %93, %94 : vector<16x32xf32>
    %96 = arith.addf %85, %95 : vector<16x32xf32>
    %cst_37 = arith.constant dense<0.000000e+00> : vector<16xf32>
    %97 = vector.multi_reduction <add>, %96, %cst_37 [1] : vector<16x32xf32> to vector<16xf32>
    %98 = vector.shape_cast %97 : vector<16xf32> to vector<16x1xf32>
    %cst_38 = arith.constant 3.200000e+01 : f32
    %99 = vector.broadcast %cst_38 : f32 to vector<16x1xf32>
    %100 = arith.divf %98, %99 : vector<16x1xf32>
    %101 = vector.broadcast %100 : vector<16x1xf32> to vector<16x32xf32>
    %102 = arith.subf %96, %101 : vector<16x32xf32>
    %103 = arith.mulf %102, %102 : vector<16x32xf32>
    %cst_39 = arith.constant dense<0.000000e+00> : vector<16xf32>
    %104 = vector.multi_reduction <add>, %103, %cst_39 [1] : vector<16x32xf32> to vector<16xf32>
    %105 = vector.shape_cast %104 : vector<16xf32> to vector<16x1xf32>
    %cst_40 = arith.constant 3.200000e+01 : f32
    %106 = vector.broadcast %cst_40 : f32 to vector<16x1xf32>
    %107 = arith.divf %105, %106 : vector<16x1xf32>
    %108 = vector.broadcast %100 : vector<16x1xf32> to vector<16x32xf32>
    %109 = arith.subf %96, %108 : vector<16x32xf32>
    %cst_41 = arith.constant 9.99999974E-6 : f32
    %110 = vector.broadcast %cst_41 : f32 to vector<16x1xf32>
    %111 = arith.addf %107, %110 : vector<16x1xf32>
    %112 = math.rsqrt %111 : vector<16x1xf32>
    %113 = vector.broadcast %112 : vector<16x1xf32> to vector<16x32xf32>
    %114 = arith.mulf %109, %113 : vector<16x32xf32>
    %115 = vector.broadcast %17 : vector<1x32xf32> to vector<16x32xf32>
    %116 = arith.mulf %114, %115 : vector<16x32xf32>
    %117 = vector.broadcast %18 : vector<1x32xf32> to vector<16x32xf32>
    %118 = arith.addf %116, %117 : vector<16x32xf32>
    %c224 = arith.constant 224 : index
    %c0_42 = arith.constant 0 : index
    %119 = vector.load %arg1[%c224, %c0_42] : memref<448x128xbf16, #tpu.memory_space<vmem>>, vector<32x32xbf16>
    %c256 = arith.constant 256 : index
    %c0_43 = arith.constant 0 : index
    %120 = vector.load %arg1[%c256, %c0_43] : memref<448x128xbf16, #tpu.memory_space<vmem>>, vector<32x32xbf16>
    %c288 = arith.constant 288 : index
    %c0_44 = arith.constant 0 : index
    %121 = vector.load %arg1[%c288, %c0_44] : memref<448x128xbf16, #tpu.memory_space<vmem>>, vector<32x32xbf16>
    %c320 = arith.constant 320 : index
    %c0_45 = arith.constant 0 : index
    %122 = vector.load %arg1[%c320, %c0_45] : memref<448x128xbf16, #tpu.memory_space<vmem>>, vector<32x32xbf16>
    %c352 = arith.constant 352 : index
    %c0_46 = arith.constant 0 : index
    %123 = vector.load %arg1[%c352, %c0_46] : memref<448x128xbf16, #tpu.memory_space<vmem>>, vector<32x64xbf16>
    %c384 = arith.constant 384 : index
    %c0_47 = arith.constant 0 : index
    %124 = vector.load %arg1[%c384, %c0_47] : memref<448x128xbf16, #tpu.memory_space<vmem>>, vector<64x32xbf16>
    %c152 = arith.constant 152 : index
    %c0_48 = arith.constant 0 : index
    %125 = vector.load %arg2[%c152, %c0_48] : memref<168x128xf32, #tpu.memory_space<vmem>>, vector<1x32xf32>
    %c153 = arith.constant 153 : index
    %c0_49 = arith.constant 0 : index
    %126 = vector.load %arg2[%c153, %c0_49] : memref<168x128xf32, #tpu.memory_space<vmem>>, vector<1x32xf32>
    %c154 = arith.constant 154 : index
    %c0_50 = arith.constant 0 : index
    %127 = vector.load %arg2[%c154, %c0_50] : memref<168x128xf32, #tpu.memory_space<vmem>>, vector<1x32xf32>
    %c155 = arith.constant 155 : index
    %c0_51 = arith.constant 0 : index
    %128 = vector.load %arg2[%c155, %c0_51] : memref<168x128xf32, #tpu.memory_space<vmem>>, vector<1x32xf32>
    %c156 = arith.constant 156 : index
    %c0_52 = arith.constant 0 : index
    %129 = vector.load %arg2[%c156, %c0_52] : memref<168x128xf32, #tpu.memory_space<vmem>>, vector<1x64xf32>
    %c157 = arith.constant 157 : index
    %c0_53 = arith.constant 0 : index
    %130 = vector.load %arg2[%c157, %c0_53] : memref<168x128xf32, #tpu.memory_space<vmem>>, vector<1x32xf32>
    %c158 = arith.constant 158 : index
    %c0_54 = arith.constant 0 : index
    %131 = vector.load %arg2[%c158, %c0_54] : memref<168x128xf32, #tpu.memory_space<vmem>>, vector<1x32xf32>
    %c159 = arith.constant 159 : index
    %c0_55 = arith.constant 0 : index
    %132 = vector.load %arg2[%c159, %c0_55] : memref<168x128xf32, #tpu.memory_space<vmem>>, vector<1x32xf32>
    %c160_56 = arith.constant 160 : index
    %c0_57 = arith.constant 0 : index
    %133 = vector.load %arg2[%c160_56, %c0_57] : memref<168x128xf32, #tpu.memory_space<vmem>>, vector<1x32xf32>
    %c161 = arith.constant 161 : index
    %c0_58 = arith.constant 0 : index
    %134 = vector.load %arg2[%c161, %c0_58] : memref<168x128xf32, #tpu.memory_space<vmem>>, vector<1x32xf32>
    %135 = arith.truncf %118 : vector<16x32xf32> to vector<16x32xbf16>
    %cst_59 = arith.constant dense<0.000000e+00> : vector<16x32xf32>
    %136 = tpu.matmul %135, %119, %cst_59 {dimension_numbers = #tpu.dot_dimension_numbers<[1], [0], [0], [1], [0, 0, 1, 1], [], []>} : vector<16x32xbf16>, vector<32x32xbf16>, vector<16x32xf32> -> vector<16x32xf32>
    %137 = vector.broadcast %125 : vector<1x32xf32> to vector<16x32xf32>
    %138 = arith.addf %136, %137 : vector<16x32xf32>
    %139 = arith.truncf %118 : vector<16x32xf32> to vector<16x32xbf16>
    %cst_60 = arith.constant dense<0.000000e+00> : vector<16x32xf32>
    %140 = tpu.matmul %139, %120, %cst_60 {dimension_numbers = #tpu.dot_dimension_numbers<[1], [0], [0], [1], [0, 0, 1, 1], [], []>} : vector<16x32xbf16>, vector<32x32xbf16>, vector<16x32xf32> -> vector<16x32xf32>
    %141 = vector.broadcast %126 : vector<1x32xf32> to vector<16x32xf32>
    %142 = arith.addf %140, %141 : vector<16x32xf32>
    %143 = arith.truncf %118 : vector<16x32xf32> to vector<16x32xbf16>
    %cst_61 = arith.constant dense<0.000000e+00> : vector<16x32xf32>
    %144 = tpu.matmul %143, %121, %cst_61 {dimension_numbers = #tpu.dot_dimension_numbers<[1], [0], [0], [1], [0, 0, 1, 1], [], []>} : vector<16x32xbf16>, vector<32x32xbf16>, vector<16x32xf32> -> vector<16x32xf32>
    %145 = vector.broadcast %127 : vector<1x32xf32> to vector<16x32xf32>
    %146 = arith.addf %144, %145 : vector<16x32xf32>
    %147 = tpu.concatenate %138, %138, %138, %138 in 0 : vector<16x32xf32>, vector<16x32xf32>, vector<16x32xf32>, vector<16x32xf32> -> vector<64x32xf32>
    %148 = arith.mulf %147, %2 : vector<64x32xf32>
    %149 = tpu.transpose %142, [1, 0] : vector<16x32xf32> -> vector<32x16xf32>
    %150 = arith.truncf %148 : vector<64x32xf32> to vector<64x32xbf16>
    %151 = arith.truncf %149 : vector<32x16xf32> to vector<32x16xbf16>
    %cst_62 = arith.constant dense<0.000000e+00> : vector<64x16xf32>
    %152 = tpu.matmul %150, %151, %cst_62 {dimension_numbers = #tpu.dot_dimension_numbers<[1], [0], [0], [1], [0, 0, 1, 1], [], []>} : vector<64x32xbf16>, vector<32x16xbf16>, vector<64x16xf32> -> vector<64x16xf32>
    %153 = arith.addf %152, %1 : vector<64x16xf32>
    %cst_63 = arith.constant dense<0xFF800000> : vector<64xf32>
    %154 = vector.multi_reduction <maximumf>, %153, %cst_63 [1] : vector<64x16xf32> to vector<64xf32>
    %155 = vector.shape_cast %154 : vector<64xf32> to vector<64x1xf32>
    %156 = vector.broadcast %155 : vector<64x1xf32> to vector<64x16xf32>
    %157 = arith.subf %153, %156 : vector<64x16xf32>
    %158 = math.exp %157 : vector<64x16xf32>
    %cst_64 = arith.constant dense<0.000000e+00> : vector<64xf32>
    %159 = vector.multi_reduction <add>, %158, %cst_64 [1] : vector<64x16xf32> to vector<64xf32>
    %160 = vector.shape_cast %159 : vector<64xf32> to vector<64x1xf32>
    %161 = tpu.reciprocal %160 {approx = true} : vector<64x1xf32> -> vector<64x1xf32>
    %162 = vector.broadcast %161 : vector<64x1xf32> to vector<64x16xf32>
    %163 = arith.mulf %158, %162 : vector<64x16xf32>
    %164 = arith.truncf %163 : vector<64x16xf32> to vector<64x16xbf16>
    %165 = arith.truncf %146 : vector<16x32xf32> to vector<16x32xbf16>
    %cst_65 = arith.constant dense<0.000000e+00> : vector<64x32xf32>
    %166 = tpu.matmul %164, %165, %cst_65 {dimension_numbers = #tpu.dot_dimension_numbers<[1], [0], [0], [1], [0, 0, 1, 1], [], []>} : vector<64x16xbf16>, vector<16x32xbf16>, vector<64x32xf32> -> vector<64x32xf32>
    %167 = arith.mulf %166, %2 : vector<64x32xf32>
    %168 = vector.extract_strided_slice %167 {offsets = [0, 0], sizes = [16, 32], strides = [1, 1]} : vector<64x32xf32> to vector<16x32xf32>
    %169 = vector.extract_strided_slice %167 {offsets = [16, 0], sizes = [16, 32], strides = [1, 1]} : vector<64x32xf32> to vector<16x32xf32>
    %170 = arith.addf %168, %169 : vector<16x32xf32>
    %171 = vector.extract_strided_slice %167 {offsets = [32, 0], sizes = [16, 32], strides = [1, 1]} : vector<64x32xf32> to vector<16x32xf32>
    %172 = arith.addf %170, %171 : vector<16x32xf32>
    %173 = vector.extract_strided_slice %167 {offsets = [48, 0], sizes = [16, 32], strides = [1, 1]} : vector<64x32xf32> to vector<16x32xf32>
    %174 = arith.addf %172, %173 : vector<16x32xf32>
    %175 = arith.truncf %174 : vector<16x32xf32> to vector<16x32xbf16>
    %cst_66 = arith.constant dense<0.000000e+00> : vector<16x32xf32>
    %176 = tpu.matmul %175, %122, %cst_66 {dimension_numbers = #tpu.dot_dimension_numbers<[1], [0], [0], [1], [0, 0, 1, 1], [], []>} : vector<16x32xbf16>, vector<32x32xbf16>, vector<16x32xf32> -> vector<16x32xf32>
    %177 = vector.broadcast %128 : vector<1x32xf32> to vector<16x32xf32>
    %178 = arith.addf %176, %177 : vector<16x32xf32>
    %179 = arith.addf %118, %178 : vector<16x32xf32>
    %cst_67 = arith.constant dense<0.000000e+00> : vector<16xf32>
    %180 = vector.multi_reduction <add>, %179, %cst_67 [1] : vector<16x32xf32> to vector<16xf32>
    %181 = vector.shape_cast %180 : vector<16xf32> to vector<16x1xf32>
    %cst_68 = arith.constant 3.200000e+01 : f32
    %182 = vector.broadcast %cst_68 : f32 to vector<16x1xf32>
    %183 = arith.divf %181, %182 : vector<16x1xf32>
    %184 = vector.broadcast %183 : vector<16x1xf32> to vector<16x32xf32>
    %185 = arith.subf %179, %184 : vector<16x32xf32>
    %186 = arith.mulf %185, %185 : vector<16x32xf32>
    %cst_69 = arith.constant dense<0.000000e+00> : vector<16xf32>
    %187 = vector.multi_reduction <add>, %186, %cst_69 [1] : vector<16x32xf32> to vector<16xf32>
    %188 = vector.shape_cast %187 : vector<16xf32> to vector<16x1xf32>
    %cst_70 = arith.constant 3.200000e+01 : f32
    %189 = vector.broadcast %cst_70 : f32 to vector<16x1xf32>
    %190 = arith.divf %188, %189 : vector<16x1xf32>
    %191 = vector.broadcast %183 : vector<16x1xf32> to vector<16x32xf32>
    %192 = arith.subf %179, %191 : vector<16x32xf32>
    %cst_71 = arith.constant 9.99999974E-6 : f32
    %193 = vector.broadcast %cst_71 : f32 to vector<16x1xf32>
    %194 = arith.addf %190, %193 : vector<16x1xf32>
    %195 = math.rsqrt %194 : vector<16x1xf32>
    %196 = vector.broadcast %195 : vector<16x1xf32> to vector<16x32xf32>
    %197 = arith.mulf %192, %196 : vector<16x32xf32>
    %198 = vector.broadcast %131 : vector<1x32xf32> to vector<16x32xf32>
    %199 = arith.mulf %197, %198 : vector<16x32xf32>
    %200 = vector.broadcast %132 : vector<1x32xf32> to vector<16x32xf32>
    %201 = arith.addf %199, %200 : vector<16x32xf32>
    %202 = arith.truncf %201 : vector<16x32xf32> to vector<16x32xbf16>
    %cst_72 = arith.constant dense<0.000000e+00> : vector<16x64xf32>
    %203 = tpu.matmul %202, %123, %cst_72 {dimension_numbers = #tpu.dot_dimension_numbers<[1], [0], [0], [1], [0, 0, 1, 1], [], []>} : vector<16x32xbf16>, vector<32x64xbf16>, vector<16x64xf32> -> vector<16x64xf32>
    %204 = vector.broadcast %129 : vector<1x64xf32> to vector<16x64xf32>
    %205 = arith.addf %203, %204 : vector<16x64xf32>
    %cst_73 = arith.constant 0.000000e+00 : f32
    %206 = vector.broadcast %cst_73 : f32 to vector<16x64xf32>
    %207 = arith.maximumf %205, %206 : vector<16x64xf32>
    %208 = arith.truncf %207 : vector<16x64xf32> to vector<16x64xbf16>
    %cst_74 = arith.constant dense<0.000000e+00> : vector<16x32xf32>
    %209 = tpu.matmul %208, %124, %cst_74 {dimension_numbers = #tpu.dot_dimension_numbers<[1], [0], [0], [1], [0, 0, 1, 1], [], []>} : vector<16x64xbf16>, vector<64x32xbf16>, vector<16x32xf32> -> vector<16x32xf32>
    %210 = vector.broadcast %130 : vector<1x32xf32> to vector<16x32xf32>
    %211 = arith.addf %209, %210 : vector<16x32xf32>
    %212 = arith.addf %201, %211 : vector<16x32xf32>
    %cst_75 = arith.constant dense<0.000000e+00> : vector<16xf32>
    %213 = vector.multi_reduction <add>, %212, %cst_75 [1] : vector<16x32xf32> to vector<16xf32>
    %214 = vector.shape_cast %213 : vector<16xf32> to vector<16x1xf32>
    %cst_76 = arith.constant 3.200000e+01 : f32
    %215 = vector.broadcast %cst_76 : f32 to vector<16x1xf32>
    %216 = arith.divf %214, %215 : vector<16x1xf32>
    %217 = vector.broadcast %216 : vector<16x1xf32> to vector<16x32xf32>
    %218 = arith.subf %212, %217 : vector<16x32xf32>
    %219 = arith.mulf %218, %218 : vector<16x32xf32>
    %cst_77 = arith.constant dense<0.000000e+00> : vector<16xf32>
    %220 = vector.multi_reduction <add>, %219, %cst_77 [1] : vector<16x32xf32> to vector<16xf32>
    %221 = vector.shape_cast %220 : vector<16xf32> to vector<16x1xf32>
    %cst_78 = arith.constant 3.200000e+01 : f32
    %222 = vector.broadcast %cst_78 : f32 to vector<16x1xf32>
    %223 = arith.divf %221, %222 : vector<16x1xf32>
    %224 = vector.broadcast %216 : vector<16x1xf32> to vector<16x32xf32>
    %225 = arith.subf %212, %224 : vector<16x32xf32>
    %cst_79 = arith.constant 9.99999974E-6 : f32
    %226 = vector.broadcast %cst_79 : f32 to vector<16x1xf32>
    %227 = arith.addf %223, %226 : vector<16x1xf32>
    %228 = math.rsqrt %227 : vector<16x1xf32>
    %229 = vector.broadcast %228 : vector<16x1xf32> to vector<16x32xf32>
    %230 = arith.mulf %225, %229 : vector<16x32xf32>
    %231 = vector.broadcast %133 : vector<1x32xf32> to vector<16x32xf32>
    %232 = arith.mulf %230, %231 : vector<16x32xf32>
    %233 = vector.broadcast %134 : vector<1x32xf32> to vector<16x32xf32>
    %234 = arith.addf %232, %233 : vector<16x32xf32>
    %c128_80 = arith.constant 128 : index
    %c0_81 = arith.constant 0 : index
    %235 = vector.load %arg2[%c128_80, %c0_81] : memref<168x128xf32, #tpu.memory_space<vmem>>, vector<1x32xf32>
    %c129 = arith.constant 129 : index
    %c0_82 = arith.constant 0 : index
    %236 = vector.load %arg2[%c129, %c0_82] : memref<168x128xf32, #tpu.memory_space<vmem>>, vector<1x32xf32>
    %cst_83 = arith.constant dense<0.000000e+00> : vector<16xf32>
    %237 = vector.multi_reduction <add>, %234, %cst_83 [1] : vector<16x32xf32> to vector<16xf32>
    %238 = vector.shape_cast %237 : vector<16xf32> to vector<16x1xf32>
    %cst_84 = arith.constant 3.200000e+01 : f32
    %239 = vector.broadcast %cst_84 : f32 to vector<16x1xf32>
    %240 = arith.divf %238, %239 : vector<16x1xf32>
    %241 = vector.broadcast %240 : vector<16x1xf32> to vector<16x32xf32>
    %242 = arith.subf %234, %241 : vector<16x32xf32>
    %243 = arith.mulf %242, %242 : vector<16x32xf32>
    %cst_85 = arith.constant dense<0.000000e+00> : vector<16xf32>
    %244 = vector.multi_reduction <add>, %243, %cst_85 [1] : vector<16x32xf32> to vector<16xf32>
    %245 = vector.shape_cast %244 : vector<16xf32> to vector<16x1xf32>
    %cst_86 = arith.constant 3.200000e+01 : f32
    %246 = vector.broadcast %cst_86 : f32 to vector<16x1xf32>
    %247 = arith.divf %245, %246 : vector<16x1xf32>
    %248 = vector.broadcast %240 : vector<16x1xf32> to vector<16x32xf32>
    %249 = arith.subf %234, %248 : vector<16x32xf32>
    %cst_87 = arith.constant 9.99999974E-6 : f32
    %250 = vector.broadcast %cst_87 : f32 to vector<16x1xf32>
    %251 = arith.addf %247, %250 : vector<16x1xf32>
    %252 = math.rsqrt %251 : vector<16x1xf32>
    %253 = vector.broadcast %252 : vector<16x1xf32> to vector<16x32xf32>
    %254 = arith.mulf %249, %253 : vector<16x32xf32>
    %255 = vector.broadcast %235 : vector<1x32xf32> to vector<16x32xf32>
    %256 = arith.mulf %254, %255 : vector<16x32xf32>
    %257 = vector.broadcast %236 : vector<1x32xf32> to vector<16x32xf32>
    %258 = arith.addf %256, %257 : vector<16x32xf32>
    %c0_88 = arith.constant 0 : index
    %c0_89 = arith.constant 0 : index
    %259 = vector.load %arg3[%c0_88, %c0_89] : memref<16x32xf32, #tpu.memory_space<vmem>>, vector<16x32xf32>
    tpu.vector_store %arg3[%c0_88, %c0_89], %258 {strides = array<i32>} : memref<16x32xf32, #tpu.memory_space<vmem>>, vector<16x32xf32>,
    return
  }
}

</mosaic_0001>

<llo_original>
// kernel: encoder_forward.1
$region0: #{encoder_forward.1}
  #allocation0 [shape = 'u32[]', space=smem, size = 0x4, offset = 0x4, fixed_abs, tag = 'smem constant byte address 0x4 - core index']
  #allocation1 [shape = 'u32[144,128]{1,0:T(1,128)}', space=vmem, size = 0x12000, scoped, tag = 'internal scratch']
  %s0 = inlined_call_operand.hbm [shape: f32[16,32], index: 0, kind: input, shape index: {}]
  %s1 = inlined_call_operand.hbm [shape: bf16[448,128], index: 1, kind: input, shape index: {}]
  %s2 = inlined_call_operand.hbm [shape: f32[168,128], index: 2, kind: input, shape index: {}]
  %s3 = inlined_call_operand.hbm [shape: f32[16,32], index: 3, kind: output, shape index: {}]
  %s4 = sld [smem:[#allocation0]]
  $region34: #{encoder_forward.1} parent=0
    _
  %s6 = ssub.s32 1, %s4
  %s7 = scalar_select 0, %s6, %s4
  $region1: #{encoder_forward.1} parent=0
    #allocation2 [shape = 'u8[8192]{0}', space=vmem, size = 0x2000, scoped, tag = 'input window, operand 0, single buffered']
    #allocation3 [shape = 's32[1]{0}', space=sflag, size = 0x4, scoped, tag = 'scoped memory for encoder_forward.1']
    #allocation4 [shape = 's32[1]{0}', space=sflag, size = 0x4, scoped, tag = 'scoped memory for encoder_forward.1']
    #allocation5 [shape = 'u8[114688]{0}', space=vmem, size = 0x1c000, scoped, tag = 'input window, operand 1, single buffered']
    #allocation6 [shape = 's32[1]{0}', space=sflag, size = 0x4, scoped, tag = 'scoped memory for encoder_forward.1']
    #allocation7 [shape = 'u8[86016]{0}', space=vmem, size = 0x15000, scoped, tag = 'input window, operand 2, single buffered']
    #allocation8 [shape = 'u8[8192]{0}', space=vmem, size = 0x2000, scoped, tag = 'output window, operand 0, single buffered']
    %8 = vsyncpa [#allocation3], 0
    %9 = vsyncpa [#allocation6], 0
    %10 = vsyncpa [#allocation4], 0
    // Predicated region
    $region2: #{encoder_forward.1} parent=1 // pred_check
      _
    $region3: #{encoder_forward.1} parent=1 // pred_check_branch
      %12 = sbr.rel (0) target = $region5
    $region4: #{encoder_forward.1} parent=1 // pred_region
      %s14 = ssub.s32 256, 256
      %15 = vsyncadd [#allocation3], %s14
      %s16 = sshll.u32 [#allocation2], 4
      %s17 = int_to_ptr.vmem [resolvable:$true] %s16
      %22 = dma.hbm_to_vmem [thread:$0]  %s0, 256, %s17, [#allocation3], 128, 128, 8
    $region5: #{encoder_forward.1} parent=1 // pred_fallthru
      _
    // Predicated region
    $region6: #{encoder_forward.1} parent=1 // pred_check
      _
    $region7: #{encoder_forward.1} parent=1 // pred_check_branch
      %24 = sbr.rel (0) target = $region9
    $region8: #{encoder_forward.1} parent=1 // pred_region
      %s26 = ssub.s32 3584, 3584
      %27 = vsyncadd [#allocation6], %s26
      %s28 = sshll.u32 [#allocation5], 4
      %s29 = int_to_ptr.vmem [resolvable:$true] %s28
      %34 = dma.hbm_to_vmem [thread:$0]  %s1, 3584, %s29, [#allocation6], 64, 64, 4
    $region9: #{encoder_forward.1} parent=1 // pred_fallthru
      _
    // Predicated region
    $region10: #{encoder_forward.1} parent=1 // pred_check
      _
    $region11: #{encoder_forward.1} parent=1 // pred_check_branch
      %36 = sbr.rel (0) target = $region13
    $region12: #{encoder_forward.1} parent=1 // pred_region
      %s38 = ssub.s32 2688, 2688
      %39 = vsyncadd [#allocation6], %s38
      %s40 = sshll.u32 [#allocation7], 4
      %s41 = int_to_ptr.vmem [resolvable:$true] %s40
      %46 = dma.hbm_to_vmem [thread:$0]  %s2, 2688, %s41, [#allocation6], 128, 128, 8
    $region13: #{encoder_forward.1} parent=1 // pred_fallthru
      _
    // Predicated region
    $region14: #{encoder_forward.1} parent=1 // pred_check
      _
    $region15: #{encoder_forward.1} parent=1 // pred_check_branch
      %48 = sbr.rel (0) target = $region17
    $region16: #{encoder_forward.1} parent=1 // pred_region
      %49 = dma.done [#allocation3], 256
    $region17: #{encoder_forward.1} parent=1 // pred_fallthru
      _
    // Predicated region
    $region18: #{encoder_forward.1} parent=1 // pred_check
      _
    $region19: #{encoder_forward.1} parent=1 // pred_check_branch
      %51 = sbr.rel (0) target = $region21
    $region20: #{encoder_forward.1} parent=1 // pred_region
      %52 = dma.done [#allocation6], 3584
    $region21: #{encoder_forward.1} parent=1 // pred_fallthru
      _
    // Predicated region
    $region22: #{encoder_forward.1} parent=1 // pred_check
      _
    $region23: #{encoder_forward.1} parent=1 // pred_check_branch
      %54 = sbr.rel (0) target = $region25
    $region24: #{encoder_forward.1} parent=1 // pred_region
      %55 = dma.done [#allocation6], 2688
    $region25: #{encoder_forward.1} parent=1 // pred_fallthru
      _
    %v57 = vld [vmem:[#allocation2] sm:$0xff]
    %v58 = vld [vmem:[#allocation2 + $0x8] sm:$0xff]
    %v59 = vld [vmem:[#allocation7] sm:$0xff]
    %v60 = vld [vmem:[#allocation7 + $0x8] sm:$0xff]
    %v61 = vld [vmem:[#allocation7 + $0x10] sm:$0xff]
    %v62 = vld [vmem:[#allocation7 + $0x18] sm:$0xff]
    %v63 = vld [vmem:[#allocation7 + $0x20] sm:$0xff]
    %v64 = vld [vmem:[#allocation7 + $0x28] sm:$0xff]
    %v65 = vld [vmem:[#allocation7 + $0x30] sm:$0xff]
    %v66 = vld [vmem:[#allocation7 + $0x38] sm:$0xff]
    %v67 = vld [vmem:[#allocation7 + $0x40] sm:$0xff]
    %v68 = vld [vmem:[#allocation7 + $0x48] sm:$0xff]
    %v69 = vld [vmem:[#allocation7 + $0x50] sm:$0xff]
    %v70 = vld [vmem:[#allocation7 + $0x58] sm:$0xff]
    %v71 = vld [vmem:[#allocation7 + $0x60] sm:$0xff]
    %v72 = vld [vmem:[#allocation7 + $0x68] sm:$0xff]
    %v73 = vld [vmem:[#allocation7 + $0x70] sm:$0xff]
    %v74 = vld [vmem:[#allocation7 + $0x78] sm:$0xff]
    %v75 = vld [vmem:[#allocation5] sm:$0xf]
    %v76 = vld [vmem:[#allocation5 + $0x4] sm:$0xf]
    %v77 = vld [vmem:[#allocation5 + $0x8] sm:$0xf]
    %v78 = vld [vmem:[#allocation5 + $0xc] sm:$0xf]
    %v79 = vld [vmem:[#allocation5 + $0x10] sm:$0xf]
    %v80 = vld [vmem:[#allocation5 + $0x14] sm:$0xf]
    %v81 = vld [vmem:[#allocation5 + $0x18] sm:$0xf]
    %v82 = vld [vmem:[#allocation5 + $0x1c] sm:$0xf]
    %v83 = vld [vmem:[#allocation5 + $0x20] sm:$0xf]
    %v84 = vld [vmem:[#allocation5 + $0x24] sm:$0xf]
    %v85 = vld [vmem:[#allocation5 + $0x28] sm:$0xf]
    %v86 = vld [vmem:[#allocation5 + $0x2c] sm:$0xf]
    %v87 = vld [vmem:[#allocation5 + $0x30] sm:$0xf]
    %v88 = vld [vmem:[#allocation5 + $0x34] sm:$0xf]
    %v89 = vld [vmem:[#allocation5 + $0x38] sm:$0xf]
    %v90 = vld [vmem:[#allocation5 + $0x3c] sm:$0xf]
    %v91 = vld [vmem:[#allocation5 + $0x40] sm:$0xf]
    %v92 = vld [vmem:[#allocation5 + $0x44] sm:$0xf]
    %v93 = vld [vmem:[#allocation5 + $0x48] sm:$0xf]
    %v94 = vld [vmem:[#allocation5 + $0x4c] sm:$0xf]
    %v95 = vld [vmem:[#allocation5 + $0x50] sm:$0xf]
    %v96 = vld [vmem:[#allocation5 + $0x54] sm:$0xf]
    %v97 = vld [vmem:[#allocation5 + $0x58] sm:$0xf]
    %v98 = vld [vmem:[#allocation5 + $0x5c] sm:$0xf]
    %v99 = vld [vmem:[#allocation5 + $0x60] sm:$0xf]
    %v100 = vld [vmem:[#allocation5 + $0x64] sm:$0xf]
    %v101 = vld [vmem:[#allocation5 + $0x68] sm:$0xf]
    %v102 = vld [vmem:[#allocation5 + $0x6c] sm:$0xf]
    %v103 = vld [vmem:[#allocation7 + $0x88] sm:$0x1]
    %v104 = vld [vmem:[#allocation7 + $0x89] sm:$0x1]
    %v105 = vld [vmem:[#allocation7 + $0x8a] sm:$0x1]
    %v106 = vld [vmem:[#allocation7 + $0x8b] sm:$0x1]
    %v107 = vld [vmem:[#allocation7 + $0x8c] sm:$0x1]
    %v108 = vld [vmem:[#allocation7 + $0x8d] sm:$0x1]
    %v109 = vld [vmem:[#allocation7 + $0x8e] sm:$0x1]
    %v110 = vld [vmem:[#allocation7 + $0x8f] sm:$0x1]
    %v111 = vld [vmem:[#allocation7 + $0x90] sm:$0x1]
    %v112 = vld [vmem:[#allocation7 + $0x91] sm:$0x1]
    %v113 = vpack.c.bf16 %v58, %v57
    %v114 = vlaneseq
    %v115 = vshrl.u32 %v114, 7
    %v116 = vsub.s32 0, %v115
    %v117 = vrot.slane %v103, %v116
    %v122 = vunpack.c.l.b16 %v75
    %v123 = vunpack.c.l.b16 %v76
    %v124 = vunpack.c.l.b16 %v77
    %v125 = vunpack.c.l.b16 %v78
    %v126 = vpack.c.b16 %v123, %v122
    %v127 = vpack.c.b16 %v125, %v124
    %vm130 = vcmask 261120
    %v132 = vsel %vm130, %v113, 0
    %134 = vmatprep.subr.bf16.mxu0 0
    %135 = vmatpush1.bf16.msra.mxu0 %v126
    %136 = vmatprep.subr.bf16.mxu0 0
    %137 = vmatpush1.bf16.msra.mxu0 %v127
    %138 = vmatprep.subr.bf16.mxu0 0
    %139 = vmatpush1.bf16.msra.mxu0 0
    %140 = vmatprep.subr.bf16.mxu0 0
    %141 = vmatpush1.bf16.msra.mxu0 0
    %142 = vmatprep.subr.bf16.mxu0 0
    %143 = vmatpush1.bf16.msra.mxu0 0
    %144 = vmatprep.subr.bf16.mxu0 0
    %145 = vmatpush1.bf16.msra.mxu0 0
    %146 = vmatprep.subr.bf16.mxu0 0
    %147 = vmatpush1.bf16.msra.mxu0 0
    %148 = vmatprep.subr.bf16.mxu0 0
    %149 = vmatpush1.bf16.msra.mxu0 0
    %150 = vmatprep.subr.bf16.mxu0 0
    %151 = vmatpush1.bf16.msra.mxu0 0
    %152 = vmatprep.subr.bf16.mxu0 0
    %153 = vmatpush1.bf16.msra.mxu0 0
    %154 = vmatprep.subr.bf16.mxu0 0
    %155 = vmatpush1.bf16.msra.mxu0 0
    %156 = vmatprep.subr.bf16.mxu0 0
    %157 = vmatpush1.bf16.msra.mxu0 0
    %158 = vmatprep.subr.bf16.mxu0 0
    %159 = vmatpush1.bf16.msra.mxu0 0
    %160 = vmatprep.subr.bf16.mxu0 0
    %161 = vmatpush1.bf16.msra.mxu0 0
    %162 = vmatprep.subr.bf16.mxu0 0
    %163 = vmatpush1.bf16.msra.mxu0 0
    %164 = vmatprep.subr.bf16.mxu0 0
    %165 = vmatpush1.bf16.msra.mxu0 0
    %166 = vmatprep.mubr.bf16.mxu0 0
    %167 = vmatmul.mubr.bf16.gmra.mrb[0].mxu0 %v132
    %v168 = vpop.f32.mrb[0].mxu0
    %v169 = vadd.f32 %v117, %v168
    %v170 = vpop.f32.mrb[0].mxu0
    %v171 = vpop.f32.mrb[0].mxu0
    %v172 = vadd.f32 %v117, %v171
    %v173 = vpop.f32.mrb[0].mxu0
    %174 = vdwg.mxu0
    %v175 = vlaneseq
    %v176 = vshrl.u32 %v175, 7
    %v177 = vsub.s32 0, %v176
    %v178 = vrot.slane %v104, %v177
    %v183 = vunpack.c.l.b16 %v79
    %v184 = vunpack.c.l.b16 %v80
    %v185 = vunpack.c.l.b16 %v81
    %v186 = vunpack.c.l.b16 %v82
    %v187 = vpack.c.b16 %v184, %v183
    %v188 = vpack.c.b16 %v186, %v185
    %191 = vmatprep.subr.bf16.mxu0 0
    %192 = vmatpush1.bf16.msra.mxu0 %v187
    %193 = vmatprep.subr.bf16.mxu0 0
    %194 = vmatpush1.bf16.msra.mxu0 %v188
    %195 = vmatprep.subr.bf16.mxu0 0
    %196 = vmatpush1.bf16.msra.mxu0 0
    %197 = vmatprep.subr.bf16.mxu0 0
    %198 = vmatpush1.bf16.msra.mxu0 0
    %199 = vmatprep.subr.bf16.mxu0 0
    %200 = vmatpush1.bf16.msra.mxu0 0
    %201 = vmatprep.subr.bf16.mxu0 0
    %202 = vmatpush1.bf16.msra.mxu0 0
    %203 = vmatprep.subr.bf16.mxu0 0
    %204 = vmatpush1.bf16.msra.mxu0 0
    %205 = vmatprep.subr.bf16.mxu0 0
    %206 = vmatpush1.bf16.msra.mxu0 0
    %207 = vmatprep.subr.bf16.mxu0 0
    %208 = vmatpush1.bf16.msra.mxu0 0
    %209 = vmatprep.subr.bf16.mxu0 0
    %210 = vmatpush1.bf16.msra.mxu0 0
    %211 = vmatprep.subr.bf16.mxu0 0
    %212 = vmatpush1.bf16.msra.mxu0 0
    %213 = vmatprep.subr.bf16.mxu0 0
    %214 = vmatpush1.bf16.msra.mxu0 0
    %215 = vmatprep.subr.bf16.mxu0 0
    %216 = vmatpush1.bf16.msra.mxu0 0
    %217 = vmatprep.subr.bf16.mxu0 0
    %218 = vmatpush1.bf16.msra.mxu0 0
    %219 = vmatprep.subr.bf16.mxu0 0
    %220 = vmatpush1.bf16.msra.mxu0 0
    %221 = vmatprep.subr.bf16.mxu0 0
    %222 = vmatpush1.bf16.msra.mxu0 0
    %223 = vmatprep.mubr.bf16.mxu0 0
    %224 = vmatmul.mubr.bf16.gmra.mrb[0].mxu0 %v132
    %v225 = vpop.f32.mrb[0].mxu0
    %v226 = vadd.f32 %v178, %v225
    %v227 = vpop.f32.mrb[0].mxu0
    %v228 = vpop.f32.mrb[0].mxu0
    %v229 = vadd.f32 %v178, %v228
    %v230 = vpop.f32.mrb[0].mxu0
    %231 = vdwg.mxu0
    %v232 = vlaneseq
    %v233 = vshrl.u32 %v232, 7
    %v234 = vsub.s32 0, %v233
    %v235 = vrot.slane %v105, %v234
    %v240 = vunpack.c.l.b16 %v83
    %v241 = vunpack.c.l.b16 %v84
    %v242 = vunpack.c.l.b16 %v85
    %v243 = vunpack.c.l.b16 %v86
    %v244 = vpack.c.b16 %v241, %v240
    %v245 = vpack.c.b16 %v243, %v242
    %248 = vmatprep.subr.bf16.mxu0 0
    %249 = vmatpush1.bf16.msra.mxu0 %v244
    %250 = vmatprep.subr.bf16.mxu0 0
    %251 = vmatpush1.bf16.msra.mxu0 %v245
    %252 = vmatprep.subr.bf16.mxu0 0
    %253 = vmatpush1.bf16.msra.mxu0 0
    %254 = vmatprep.subr.bf16.mxu0 0
    %255 = vmatpush1.bf16.msra.mxu0 0
    %256 = vmatprep.subr.bf16.mxu0 0
    %257 = vmatpush1.bf16.msra.mxu0 0
    %258 = vmatprep.subr.bf16.mxu0 0
    %259 = vmatpush1.bf16.msra.mxu0 0
    %260 = vmatprep.subr.bf16.mxu0 0
    %261 = vmatpush1.bf16.msra.mxu0 0
    %262 = vmatprep.subr.bf16.mxu0 0
    %263 = vmatpush1.bf16.msra.mxu0 0
    %264 = vmatprep.subr.bf16.mxu0 0
    %265 = vmatpush1.bf16.msra.mxu0 0
    %266 = vmatprep.subr.bf16.mxu0 0
    %267 = vmatpush1.bf16.msra.mxu0 0
    %268 = vmatprep.subr.bf16.mxu0 0
    %269 = vmatpush1.bf16.msra.mxu0 0
    %270 = vmatprep.subr.bf16.mxu0 0
    %271 = vmatpush1.bf16.msra.mxu0 0
    %272 = vmatprep.subr.bf16.mxu0 0
    %273 = vmatpush1.bf16.msra.mxu0 0
    %274 = vmatprep.subr.bf16.mxu0 0
    %275 = vmatpush1.bf16.msra.mxu0 0
    %276 = vmatprep.subr.bf16.mxu0 0
    %277 = vmatpush1.bf16.msra.mxu0 0
    %278 = vmatprep.subr.bf16.mxu0 0
    %279 = vmatpush1.bf16.msra.mxu0 0
    %280 = vmatprep.mubr.bf16.mxu0 0
    %281 = vmatmul.mubr.bf16.gmra.mrb[0].mxu0 %v132
    %v282 = vpop.f32.mrb[0].mxu0
    %v283 = vadd.f32 %v235, %v282
    %v284 = vpop.f32.mrb[0].mxu0
    %v285 = vpop.f32.mrb[0].mxu0
    %v286 = vadd.f32 %v235, %v285
    %v287 = vpop.f32.mrb[0].mxu0
    %288 = vdwg.mxu0
    %v289 = vmul.f32 %v169, %v67
    %v290 = vmul.f32 %v172, %v68
    %v291 = vmul.f32 %v169, %v69
    %v292 = vmul.f32 %v172, %v70
    %v293 = vmul.f32 %v169, %v71
    %v294 = vmul.f32 %v172, %v72
    %v295 = vmul.f32 %v169, %v73
    %v296 = vmul.f32 %v172, %v74
    %297 = vxpose.xlu0.b32.start [1/16] %v226, 128
    %298 = vxpose.xlu0.b32.cont [2/16] %v229, 128
    %299 = vxpose.xlu0.b32.cont [3/16] 0.0, 128
    %300 = vxpose.xlu0.b32.cont [4/16] 0.0, 128
    %301 = vxpose.xlu0.b32.cont [5/16] 0.0, 128
    %302 = vxpose.xlu0.b32.cont [6/16] 0.0, 128
    %303 = vxpose.xlu0.b32.cont [7/16] 0.0, 128
    %304 = vxpose.xlu0.b32.cont [8/16] 0.0, 128
    %305 = vxpose.xlu0.b32.cont [9/16] 0.0, 128
    %306 = vxpose.xlu0.b32.cont [10/16] 0.0, 128
    %307 = vxpose.xlu0.b32.cont [11/16] 0.0, 128
    %308 = vxpose.xlu0.b32.cont [12/16] 0.0, 128
    %309 = vxpose.xlu0.b32.cont [13/16] 0.0, 128
    %310 = vxpose.xlu0.b32.cont [14/16] 0.0, 128
    %311 = vxpose.xlu0.b32.cont [15/16] 0.0, 128
    %312 = vxpose.xlu0.b32.end [16/16] 0.0, 128
    %v313 = vpop.trf.xlu0
    %v314 = vpop.trf.xlu0
    %v315 = vpop.trf.xlu0
    %v316 = vpop.trf.xlu0
    %v317 = vpop.trf.xlu0
    %v318 = vpop.trf.xlu0
    %v319 = vpop.trf.xlu0
    %v320 = vpop.trf.xlu0
    %v321 = vpop.trf.xlu0
    %v322 = vpop.trf.xlu0
    %v323 = vpop.trf.xlu0
    %v324 = vpop.trf.xlu0
    %v325 = vpop.trf.xlu0
    %v326 = vpop.trf.xlu0
    %v327 = vpop.trf.xlu0
    %v328 = vpop.trf.xlu0
    %v329 = vpack.c.bf16 %v290, %v289
    %v330 = vpack.c.bf16 %v292, %v291
    %v331 = vpack.c.bf16 %v294, %v293
    %v332 = vpack.c.bf16 %v296, %v295
    %v333 = vpack.c.bf16 %v314, %v313
    %v334 = vpack.c.bf16 %v316, %v315
    %v336 = vsel %vm130, %v329, 0
    %v339 = vsel %vm130, %v330, 0
    %v342 = vsel %vm130, %v331, 0
    %v345 = vsel %vm130, %v332, 0
    %347 = vmatprep.subr.bf16.mxu0 0
    %348 = vmatpush1.bf16.msra.mxu0 %v333
    %349 = vmatprep.subr.bf16.mxu0 0
    %350 = vmatpush1.bf16.msra.mxu0 %v334
    %351 = vmatprep.subr.bf16.mxu0 0
    %352 = vmatpush1.bf16.msra.mxu0 0
    %353 = vmatprep.subr.bf16.mxu0 0
    %354 = vmatpush1.bf16.msra.mxu0 0
    %355 = vmatprep.subr.bf16.mxu0 0
    %356 = vmatpush1.bf16.msra.mxu0 0
    %357 = vmatprep.subr.bf16.mxu0 0
    %358 = vmatpush1.bf16.msra.mxu0 0
    %359 = vmatprep.subr.bf16.mxu0 0
    %360 = vmatpush1.bf16.msra.mxu0 0
    %361 = vmatprep.subr.bf16.mxu0 0
    %362 = vmatpush1.bf16.msra.mxu0 0
    %363 = vmatprep.subr.bf16.mxu0 0
    %364 = vmatpush1.bf16.msra.mxu0 0
    %365 = vmatprep.subr.bf16.mxu0 0
    %366 = vmatpush1.bf16.msra.mxu0 0
    %367 = vmatprep.subr.bf16.mxu0 0
    %368 = vmatpush1.bf16.msra.mxu0 0
    %369 = vmatprep.subr.bf16.mxu0 0
    %370 = vmatpush1.bf16.msra.mxu0 0
    %371 = vmatprep.subr.bf16.mxu0 0
    %372 = vmatpush1.bf16.msra.mxu0 0
    %373 = vmatprep.subr.bf16.mxu0 0
    %374 = vmatpush1.bf16.msra.mxu0 0
    %375 = vmatprep.subr.bf16.mxu0 0
    %376 = vmatpush1.bf16.msra.mxu0 0
    %377 = vmatprep.subr.bf16.mxu0 0
    %378 = vmatpush1.bf16.msra.mxu0 0
    %379 = vmatprep.mubr.bf16.mxu0 0
    %380 = vmatmul.mubr.bf16.gmra.mrb[0].mxu0 %v336
    %v381 = vpop.f32.mrb[0].mxu0
    %v382 = vadd.f32 %v59, %v381
    %v383 = vpop.f32.mrb[0].mxu0
    %v384 = vpop.f32.mrb[0].mxu0
    %v385 = vadd.f32 %v60, %v384
    %v386 = vpop.f32.mrb[0].mxu0
    %387 = vmatprep.mubr.bf16.mxu0 0
    %388 = vmatmul.mubr.bf16.gmra.mrb[0].mxu0 %v339
    %v389 = vpop.f32.mrb[0].mxu0
    %v390 = vadd.f32 %v61, %v389
    %v391 = vpop.f32.mrb[0].mxu0
    %v392 = vpop.f32.mrb[0].mxu0
    %v393 = vadd.f32 %v62, %v392
    %v394 = vpop.f32.mrb[0].mxu0
    %395 = vmatprep.mubr.bf16.mxu0 0
    %396 = vmatmul.mubr.bf16.gmra.mrb[0].mxu0 %v342
    %v397 = vpop.f32.mrb[0].mxu0
    %v398 = vadd.f32 %v63, %v397
    %v399 = vpop.f32.mrb[0].mxu0
    %v400 = vpop.f32.mrb[0].mxu0
    %v401 = vadd.f32 %v64, %v400
    %v402 = vpop.f32.mrb[0].mxu0
    %403 = vmatprep.mubr.bf16.mxu0 0
    %404 = vmatmul.mubr.bf16.gmra.mrb[0].mxu0 %v345
    %v405 = vpop.f32.mrb[0].mxu0
    %v406 = vadd.f32 %v65, %v405
    %v407 = vpop.f32.mrb[0].mxu0
    %v408 = vpop.f32.mrb[0].mxu0
    %v409 = vadd.f32 %v66, %v408
    %v410 = vpop.f32.mrb[0].mxu0
    %411 = vdwg.mxu0
    %vm412 = vcmask 130048
    %v413 = vsel %vm412, %v382, -inf
    %414 = vmax.xlane.f32.xlu0 %v413
    %v415 = vpop.xlane.xlu0 %414
    %v416 = vsel %vm412, %v385, -inf
    %417 = vmax.xlane.f32.xlu0 %v416
    %v418 = vpop.xlane.xlu0 %417
    %v419 = vsel %vm412, %v390, -inf
    %420 = vmax.xlane.f32.xlu0 %v419
    %v421 = vpop.xlane.xlu0 %420
    %v422 = vsel %vm412, %v393, -inf
    %423 = vmax.xlane.f32.xlu0 %v422
    %v424 = vpop.xlane.xlu0 %423
    %v425 = vsel %vm412, %v398, -inf
    %426 = vmax.xlane.f32.xlu0 %v425
    %v427 = vpop.xlane.xlu0 %426
    %v428 = vsel %vm412, %v401, -inf
    %429 = vmax.xlane.f32.xlu0 %v428
    %v430 = vpop.xlane.xlu0 %429
    %v431 = vsel %vm412, %v406, -inf
    %432 = vmax.xlane.f32.xlu0 %v431
    %v433 = vpop.xlane.xlu0 %432
    %v434 = vsel %vm412, %v409, -inf
    %435 = vmax.xlane.f32.xlu0 %v434
    %v436 = vpop.xlane.xlu0 %435
    %v437 = vsub.f32 %v382, %v415
    %v438 = vsub.f32 %v385, %v418
    %v439 = vsub.f32 %v390, %v421
    %v440 = vsub.f32 %v393, %v424
    %v441 = vsub.f32 %v398, %v427
    %v442 = vsub.f32 %v401, %v430
    %v443 = vsub.f32 %v406, %v433
    %v444 = vsub.f32 %v409, %v436
    %v445 = vmul.f32 %v437, 1.442695
    %v446 = vpow.pop %v445
    %v447 = vmul.f32 %v438, 1.442695
    %v448 = vpow.pop %v447
    %v449 = vmul.f32 %v439, 1.442695
    %v450 = vpow.pop %v449
    %v451 = vmul.f32 %v440, 1.442695
    %v452 = vpow.pop %v451
    %v453 = vmul.f32 %v441, 1.442695
    %v454 = vpow.pop %v453
    %v455 = vmul.f32 %v442, 1.442695
    %v456 = vpow.pop %v455
    %v457 = vmul.f32 %v443, 1.442695
    %v458 = vpow.pop %v457
    %v459 = vmul.f32 %v444, 1.442695
    %v460 = vpow.pop %v459
    %v461 = vsel %vm412, %v446, 0.0
    %462 = vadd.xlane.f32.xlu0 %v461
    %v463 = vpop.xlane.xlu0 %462
    %v464 = vsel %vm412, %v448, 0.0
    %465 = vadd.xlane.f32.xlu0 %v464
    %v466 = vpop.xlane.xlu0 %465
    %v467 = vsel %vm412, %v450, 0.0
    %468 = vadd.xlane.f32.xlu0 %v467
    %v469 = vpop.xlane.xlu0 %468
    %v470 = vsel %vm412, %v452, 0.0
    %471 = vadd.xlane.f32.xlu0 %v470
    %v472 = vpop.xlane.xlu0 %471
    %v473 = vsel %vm412, %v454, 0.0
    %474 = vadd.xlane.f32.xlu0 %v473
    %v475 = vpop.xlane.xlu0 %474
    %v476 = vsel %vm412, %v456, 0.0
    %477 = vadd.xlane.f32.xlu0 %v476
    %v478 = vpop.xlane.xlu0 %477
    %v479 = vsel %vm412, %v458, 0.0
    %480 = vadd.xlane.f32.xlu0 %v479
    %v481 = vpop.xlane.xlu0 %480
    %v482 = vsel %vm412, %v460, 0.0
    %483 = vadd.xlane.f32.xlu0 %v482
    %v484 = vpop.xlane.xlu0 %483
    %v485 = vrcp.pop %v463
    %v486 = vrcp.pop %v466
    %v487 = vrcp.pop %v469
    %v488 = vrcp.pop %v472
    %v489 = vrcp.pop %v475
    %v490 = vrcp.pop %v478
    %v491 = vrcp.pop %v481
    %v492 = vrcp.pop %v484
    %v493 = vmul.f32 %v446, %v485
    %v494 = vmul.f32 %v448, %v486
    %v495 = vmul.f32 %v450, %v487
    %v496 = vmul.f32 %v452, %v488
    %v497 = vmul.f32 %v454, %v489
    %v498 = vmul.f32 %v456, %v490
    %v499 = vmul.f32 %v458, %v491
    %v500 = vmul.f32 %v460, %v492
    %v501 = vpack.c.bf16 %v494, %v493
    %v502 = vpack.c.bf16 %v496, %v495
    %v503 = vpack.c.bf16 %v498, %v497
    %v504 = vpack.c.bf16 %v500, %v499
    %v505 = vpack.c.bf16 %v286, %v283
    %v507 = vsel %vm412, %v501, 0
    %v510 = vsel %vm412, %v502, 0
    %v513 = vsel %vm412, %v503, 0
    %v516 = vsel %vm412, %v504, 0
    %518 = vmatprep.subr.bf16.mxu0 0
    %519 = vmatpush1.bf16.msra.mxu0 %v505
    %520 = vmatprep.subr.bf16.mxu0 0
    %521 = vmatpush1.bf16.msra.mxu0 0
    %522 = vmatprep.subr.bf16.mxu0 0
    %523 = vmatpush1.bf16.msra.mxu0 0
    %524 = vmatprep.subr.bf16.mxu0 0
    %525 = vmatpush1.bf16.msra.mxu0 0
    %526 = vmatprep.subr.bf16.mxu0 0
    %527 = vmatpush1.bf16.msra.mxu0 0
    %528 = vmatprep.subr.bf16.mxu0 0
    %529 = vmatpush1.bf16.msra.mxu0 0
    %530 = vmatprep.subr.bf16.mxu0 0
    %531 = vmatpush1.bf16.msra.mxu0 0
    %532 = vmatprep.subr.bf16.mxu0 0
    %533 = vmatpush1.bf16.msra.mxu0 0
    %534 = vmatprep.subr.bf16.mxu0 0
    %535 = vmatpush1.bf16.msra.mxu0 0
    %536 = vmatprep.subr.bf16.mxu0 0
    %537 = vmatpush1.bf16.msra.mxu0 0
    %538 = vmatprep.subr.bf16.mxu0 0
    %539 = vmatpush1.bf16.msra.mxu0 0
    %540 = vmatprep.subr.bf16.mxu0 0
    %541 = vmatpush1.bf16.msra.mxu0 0
    %542 = vmatprep.subr.bf16.mxu0 0
    %543 = vmatpush1.bf16.msra.mxu0 0
    %544 = vmatprep.subr.bf16.mxu0 0
    %545 = vmatpush1.bf16.msra.mxu0 0
    %546 = vmatprep.subr.bf16.mxu0 0
    %547 = vmatpush1.bf16.msra.mxu0 0
    %548 = vmatprep.subr.bf16.mxu0 0
    %549 = vmatpush1.bf16.msra.mxu0 0
    %550 = vmatprep.mubr.bf16.mxu0 0
    %551 = vmatmul.mubr.bf16.gmra.mrb[0].mxu0 %v507
    %v552 = vpop.f32.mrb[0].mxu0
    %v553 = vadd.f32 0.0, %v552
    %v554 = vpop.f32.mrb[0].mxu0
    %v555 = vpop.f32.mrb[0].mxu0
    %v556 = vadd.f32 0.0, %v555
    %v557 = vpop.f32.mrb[0].mxu0
    %558 = vmatprep.mubr.bf16.mxu0 0
    %559 = vmatmul.mubr.bf16.gmra.mrb[0].mxu0 %v510
    %v560 = vpop.f32.mrb[0].mxu0
    %v561 = vadd.f32 0.0, %v560
    %v562 = vpop.f32.mrb[0].mxu0
    %v563 = vpop.f32.mrb[0].mxu0
    %v564 = vadd.f32 0.0, %v563
    %v565 = vpop.f32.mrb[0].mxu0
    %566 = vmatprep.mubr.bf16.mxu0 0
    %567 = vmatmul.mubr.bf16.gmra.mrb[0].mxu0 %v513
    %v568 = vpop.f32.mrb[0].mxu0
    %v569 = vadd.f32 0.0, %v568
    %v570 = vpop.f32.mrb[0].mxu0
    %v571 = vpop.f32.mrb[0].mxu0
    %v572 = vadd.f32 0.0, %v571
    %v573 = vpop.f32.mrb[0].mxu0
    %574 = vmatprep.mubr.bf16.mxu0 0
    %575 = vmatmul.mubr.bf16.gmra.mrb[0].mxu0 %v516
    %v576 = vpop.f32.mrb[0].mxu0
    %v577 = vadd.f32 0.0, %v576
    %v578 = vpop.f32.mrb[0].mxu0
    %v579 = vpop.f32.mrb[0].mxu0
    %v580 = vadd.f32 0.0, %v579
    %v581 = vpop.f32.mrb[0].mxu0
    %582 = vdwg.mxu0
    %v583 = vmul.f32 %v553, %v67
    %v584 = vmul.f32 %v556, %v68
    %v585 = vmul.f32 %v561, %v69
    %v586 = vmul.f32 %v564, %v70
    %v587 = vmul.f32 %v569, %v71
    %v588 = vmul.f32 %v572, %v72
    %v589 = vmul.f32 %v577, %v73
    %v590 = vmul.f32 %v580, %v74
    %v591 = vadd.f32 %v583, %v585
    %v592 = vadd.f32 %v584, %v586
    %v593 = vadd.f32 %v591, %v587
    %v594 = vadd.f32 %v592, %v588
    %v595 = vadd.f32 %v593, %v589
    %v596 = vadd.f32 %v594, %v590
    %v597 = vpack.c.bf16 %v596, %v595
    %v598 = vlaneseq
    %v599 = vshrl.u32 %v598, 7
    %v600 = vsub.s32 0, %v599
    %v601 = vrot.slane %v106, %v600
    %v606 = vunpack.c.l.b16 %v87
    %v607 = vunpack.c.l.b16 %v88
    %v608 = vunpack.c.l.b16 %v89
    %v609 = vunpack.c.l.b16 %v90
    %v610 = vpack.c.b16 %v607, %v606
    %v611 = vpack.c.b16 %v609, %v608
    %v615 = vsel %vm130, %v597, 0
    %617 = vmatprep.subr.bf16.mxu0 0
    %618 = vmatpush1.bf16.msra.mxu0 %v610
    %619 = vmatprep.subr.bf16.mxu0 0
    %620 = vmatpush1.bf16.msra.mxu0 %v611
    %621 = vmatprep.subr.bf16.mxu0 0
    %622 = vmatpush1.bf16.msra.mxu0 0
    %623 = vmatprep.subr.bf16.mxu0 0
    %624 = vmatpush1.bf16.msra.mxu0 0
    %625 = vmatprep.subr.bf16.mxu0 0
    %626 = vmatpush1.bf16.msra.mxu0 0
    %627 = vmatprep.subr.bf16.mxu0 0
    %628 = vmatpush1.bf16.msra.mxu0 0
    %629 = vmatprep.subr.bf16.mxu0 0
    %630 = vmatpush1.bf16.msra.mxu0 0
    %631 = vmatprep.subr.bf16.mxu0 0
    %632 = vmatpush1.bf16.msra.mxu0 0
    %633 = vmatprep.subr.bf16.mxu0 0
    %634 = vmatpush1.bf16.msra.mxu0 0
    %635 = vmatprep.subr.bf16.mxu0 0
    %636 = vmatpush1.bf16.msra.mxu0 0
    %637 = vmatprep.subr.bf16.mxu0 0
    %638 = vmatpush1.bf16.msra.mxu0 0
    %639 = vmatprep.subr.bf16.mxu0 0
    %640 = vmatpush1.bf16.msra.mxu0 0
    %641 = vmatprep.subr.bf16.mxu0 0
    %642 = vmatpush1.bf16.msra.mxu0 0
    %643 = vmatprep.subr.bf16.mxu0 0
    %644 = vmatpush1.bf16.msra.mxu0 0
    %645 = vmatprep.subr.bf16.mxu0 0
    %646 = vmatpush1.bf16.msra.mxu0 0
    %647 = vmatprep.subr.bf16.mxu0 0
    %648 = vmatpush1.bf16.msra.mxu0 0
    %649 = vmatprep.mubr.bf16.mxu0 0
    %650 = vmatmul.mubr.bf16.gmra.mrb[0].mxu0 %v615
    %v651 = vpop.f32.mrb[0].mxu0
    %v652 = vadd.f32 %v601, %v651
    %v653 = vpop.f32.mrb[0].mxu0
    %v654 = vpop.f32.mrb[0].mxu0
    %v655 = vadd.f32 %v601, %v654
    %v656 = vpop.f32.mrb[0].mxu0
    %657 = vdwg.mxu0
    %v658 = vadd.f32 %v57, %v652
    %v659 = vadd.f32 %v58, %v655
    %v660 = vsel %vm130, %v658, 0.0
    %661 = vadd.xlane.f32.xlu0 %v660
    %v662 = vpop.xlane.xlu0 %661
    %v663 = vsel %vm130, %v659, 0.0
    %664 = vadd.xlane.f32.xlu0 %v663
    %v665 = vpop.xlane.xlu0 %664
    %v666 = vrcp.pop 32.0
    %v667 = vmul.f32 %v662, %v666
    %v668 = vmul.f32 %v665, %v666
    %v669 = vsub.f32 %v658, %v667
    %v670 = vsub.f32 %v659, %v668
    %v671 = vmul.f32 %v669, %v669
    %v672 = vmul.f32 %v670, %v670
    %v673 = vsel %vm130, %v671, 0.0
    %674 = vadd.xlane.f32.xlu0 %v673
    %v675 = vpop.xlane.xlu0 %674
    %v676 = vsel %vm130, %v672, 0.0
    %677 = vadd.xlane.f32.xlu0 %v676
    %v678 = vpop.xlane.xlu0 %677
    %v679 = vmul.f32 %v675, %v666
    %v680 = vmul.f32 %v678, %v666
    %v681 = vadd.f32 %v679, 1e-05
    %v682 = vadd.f32 %v680, 1e-05
    %v683 = vrsqrt.pop %v681
    %v684 = vrsqrt.pop %v682
    %v685 = vmul.f32 %v669, %v683
    %v686 = vmul.f32 %v670, %v684
    %v687 = vlaneseq
    %v688 = vshrl.u32 %v687, 7
    %v689 = vsub.s32 0, %v688
    %v690 = vrot.slane %v109, %v689
    %v691 = vmul.f32 %v685, %v690
    %v692 = vmul.f32 %v686, %v690
    %v693 = vlaneseq
    %v694 = vshrl.u32 %v693, 7
    %v695 = vsub.s32 0, %v694
    %v696 = vrot.slane %v110, %v695
    %v697 = vadd.f32 %v691, %v696
    %v698 = vadd.f32 %v692, %v696
    %v699 = vpack.c.bf16 %v698, %v697
    %v700 = vlaneseq
    %v701 = vshrl.u32 %v700, 7
    %v702 = vsub.s32 0, %v701
    %v703 = vrot.slane %v107, %v702
    %v708 = vunpack.c.l.b16 %v91
    %v709 = vunpack.c.l.b16 %v92
    %v710 = vunpack.c.l.b16 %v93
    %v711 = vunpack.c.l.b16 %v94
    %v712 = vpack.c.b16 %v709, %v708
    %v713 = vpack.c.b16 %v711, %v710
    %v717 = vsel %vm130, %v699, 0
    %719 = vmatprep.subr.bf16.mxu0 0
    %720 = vmatpush1.bf16.msra.mxu0 %v712
    %721 = vmatprep.subr.bf16.mxu0 0
    %722 = vmatpush1.bf16.msra.mxu0 %v713
    %723 = vmatprep.subr.bf16.mxu0 0
    %724 = vmatpush1.bf16.msra.mxu0 0
    %725 = vmatprep.subr.bf16.mxu0 0
    %726 = vmatpush1.bf16.msra.mxu0 0
    %727 = vmatprep.subr.bf16.mxu0 0
    %728 = vmatpush1.bf16.msra.mxu0 0
    %729 = vmatprep.subr.bf16.mxu0 0
    %730 = vmatpush1.bf16.msra.mxu0 0
    %731 = vmatprep.subr.bf16.mxu0 0
    %732 = vmatpush1.bf16.msra.mxu0 0
    %733 = vmatprep.subr.bf16.mxu0 0
    %734 = vmatpush1.bf16.msra.mxu0 0
    %735 = vmatprep.subr.bf16.mxu0 0
    %736 = vmatpush1.bf16.msra.mxu0 0
    %737 = vmatprep.subr.bf16.mxu0 0
    %738 = vmatpush1.bf16.msra.mxu0 0
    %739 = vmatprep.subr.bf16.mxu0 0
    %740 = vmatpush1.bf16.msra.mxu0 0
    %741 = vmatprep.subr.bf16.mxu0 0
    %742 = vmatpush1.bf16.msra.mxu0 0
    %743 = vmatprep.subr.bf16.mxu0 0
    %744 = vmatpush1.bf16.msra.mxu0 0
    %745 = vmatprep.subr.bf16.mxu0 0
    %746 = vmatpush1.bf16.msra.mxu0 0
    %747 = vmatprep.subr.bf16.mxu0 0
    %748 = vmatpush1.bf16.msra.mxu0 0
    %749 = vmatprep.subr.bf16.mxu0 0
    %750 = vmatpush1.bf16.msra.mxu0 0
    %751 = vmatprep.mubr.bf16.mxu0 0
    %752 = vmatmul.mubr.bf16.gmra.mrb[0].mxu0 %v717
    %v753 = vpop.f32.mrb[0].mxu0
    %v754 = vadd.f32 %v703, %v753
    %v755 = vpop.f32.mrb[0].mxu0
    %v756 = vpop.f32.mrb[0].mxu0
    %v757 = vadd.f32 %v703, %v756
    %v758 = vpop.f32.mrb[0].mxu0
    %759 = vdwg.mxu0
    %v760 = vmax.f32 %v754, 0.0
    %v761 = vmax.f32 %v757, 0.0
    %v762 = vpack.c.bf16 %v761, %v760
    %v763 = vlaneseq
    %v764 = vshrl.u32 %v763, 7
    %v765 = vsub.s32 0, %v764
    %v766 = vrot.slane %v108, %v765
    %v775 = vunpack.c.l.b16 %v95
    %v776 = vunpack.c.l.b16 %v96
    %v777 = vunpack.c.l.b16 %v97
    %v778 = vunpack.c.l.b16 %v98
    %v779 = vunpack.c.l.b16 %v99
    %v780 = vunpack.c.l.b16 %v100
    %v781 = vunpack.c.l.b16 %v101
    %v782 = vunpack.c.l.b16 %v102
    %v783 = vpack.c.b16 %v776, %v775
    %v784 = vpack.c.b16 %v778, %v777
    %v785 = vpack.c.b16 %v780, %v779
    %v786 = vpack.c.b16 %v782, %v781
    %vm791 = vcmask 523264
    %v793 = vsel %vm791, %v762, 0
    %795 = vmatprep.subr.bf16.mxu0 0
    %796 = vmatpush1.bf16.msra.mxu0 %v783
    %797 = vmatprep.subr.bf16.mxu0 0
    %798 = vmatpush1.bf16.msra.mxu0 %v784
    %799 = vmatprep.subr.bf16.mxu0 0
    %800 = vmatpush1.bf16.msra.mxu0 %v785
    %801 = vmatprep.subr.bf16.mxu0 0
    %802 = vmatpush1.bf16.msra.mxu0 %v786
    %803 = vmatprep.subr.bf16.mxu0 0
    %804 = vmatpush1.bf16.msra.mxu0 0
    %805 = vmatprep.subr.bf16.mxu0 0
    %806 = vmatpush1.bf16.msra.mxu0 0
    %807 = vmatprep.subr.bf16.mxu0 0
    %808 = vmatpush1.bf16.msra.mxu0 0
    %809 = vmatprep.subr.bf16.mxu0 0
    %810 = vmatpush1.bf16.msra.mxu0 0
    %811 = vmatprep.subr.bf16.mxu0 0
    %812 = vmatpush1.bf16.msra.mxu0 0
    %813 = vmatprep.subr.bf16.mxu0 0
    %814 = vmatpush1.bf16.msra.mxu0 0
    %815 = vmatprep.subr.bf16.mxu0 0
    %816 = vmatpush1.bf16.msra.mxu0 0
    %817 = vmatprep.subr.bf16.mxu0 0
    %818 = vmatpush1.bf16.msra.mxu0 0
    %819 = vmatprep.subr.bf16.mxu0 0
    %820 = vmatpush1.bf16.msra.mxu0 0
    %821 = vmatprep.subr.bf16.mxu0 0
    %822 = vmatpush1.bf16.msra.mxu0 0
    %823 = vmatprep.subr.bf16.mxu0 0
    %824 = vmatpush1.bf16.msra.mxu0 0
    %825 = vmatprep.subr.bf16.mxu0 0
    %826 = vmatpush1.bf16.msra.mxu0 0
    %827 = vmatprep.mubr.bf16.mxu0 0
    %828 = vmatmul.mubr.bf16.gmra.mrb[0].mxu0 %v793
    %v829 = vpop.f32.mrb[0].mxu0
    %v830 = vadd.f32 %v766, %v829
    %v831 = vpop.f32.mrb[0].mxu0
    %v832 = vpop.f32.mrb[0].mxu0
    %v833 = vadd.f32 %v766, %v832
    %v834 = vpop.f32.mrb[0].mxu0
    %835 = vdwg.mxu0
    %v836 = vadd.f32 %v697, %v830
    %v837 = vadd.f32 %v698, %v833
    %v838 = vsel %vm130, %v836, 0.0
    %839 = vadd.xlane.f32.xlu0 %v838
    %v840 = vpop.xlane.xlu0 %839
    %v841 = vsel %vm130, %v837, 0.0
    %842 = vadd.xlane.f32.xlu0 %v841
    %v843 = vpop.xlane.xlu0 %842
    %v844 = vmul.f32 %v840, %v666
    %v845 = vmul.f32 %v843, %v666
    %v846 = vsub.f32 %v836, %v844
    %v847 = vsub.f32 %v837, %v845
    %v848 = vmul.f32 %v846, %v846
    %v849 = vmul.f32 %v847, %v847
    %v850 = vsel %vm130, %v848, 0.0
    %851 = vadd.xlane.f32.xlu0 %v850
    %v852 = vpop.xlane.xlu0 %851
    %v853 = vsel %vm130, %v849, 0.0
    %854 = vadd.xlane.f32.xlu0 %v853
    %v855 = vpop.xlane.xlu0 %854
    %v856 = vmul.f32 %v852, %v666
    %v857 = vmul.f32 %v855, %v666
    %v858 = vadd.f32 %v856, 1e-05
    %v859 = vadd.f32 %v857, 1e-05
    %v860 = vrsqrt.pop %v858
    %v861 = vrsqrt.pop %v859
    %v862 = vmul.f32 %v846, %v860
    %v863 = vmul.f32 %v847, %v861
    %v864 = vlaneseq
    %v865 = vshrl.u32 %v864, 7
    %v866 = vsub.s32 0, %v865
    %v867 = vrot.slane %v111, %v866
    %v868 = vmul.f32 %v862, %v867
    %v869 = vmul.f32 %v863, %v867
    %v870 = vlaneseq
    %v871 = vshrl.u32 %v870, 7
    %v872 = vsub.s32 0, %v871
    %v873 = vrot.slane %v112, %v872
    %v874 = vadd.f32 %v868, %v873
    %v875 = vadd.f32 %v869, %v873
    %v876 = vld [vmem:[#allocation5 + $0x70] sm:$0xf]
    %v877 = vld [vmem:[#allocation5 + $0x74] sm:$0xf]
    %v878 = vld [vmem:[#allocation5 + $0x78] sm:$0xf]
    %v879 = vld [vmem:[#allocation5 + $0x7c] sm:$0xf]
    %v880 = vld [vmem:[#allocation5 + $0x80] sm:$0xf]
    %v881 = vld [vmem:[#allocation5 + $0x84] sm:$0xf]
    %v882 = vld [vmem:[#allocation5 + $0x88] sm:$0xf]
    %v883 = vld [vmem:[#allocation5 + $0x8c] sm:$0xf]
    %v884 = vld [vmem:[#allocation5 + $0x90] sm:$0xf]
    %v885 = vld [vmem:[#allocation5 + $0x94] sm:$0xf]
    %v886 = vld [vmem:[#allocation5 + $0x98] sm:$0xf]
    %v887 = vld [vmem:[#allocation5 + $0x9c] sm:$0xf]
    %v888 = vld [vmem:[#allocation5 + $0xa0] sm:$0xf]
    %v889 = vld [vmem:[#allocation5 + $0xa4] sm:$0xf]
    %v890 = vld [vmem:[#allocation5 + $0xa8] sm:$0xf]
    %v891 = vld [vmem:[#allocation5 + $0xac] sm:$0xf]
    %v892 = vld [vmem:[#allocation5 + $0xb0] sm:$0xf]
    %v893 = vld [vmem:[#allocation5 + $0xb4] sm:$0xf]
    %v894 = vld [vmem:[#allocation5 + $0xb8] sm:$0xf]
    %v895 = vld [vmem:[#allocation5 + $0xbc] sm:$0xf]
    %v896 = vld [vmem:[#allocation5 + $0xc0] sm:$0xf]
    %v897 = vld [vmem:[#allocation5 + $0xc4] sm:$0xf]
    %v898 = vld [vmem:[#allocation5 + $0xc8] sm:$0xf]
    %v899 = vld [vmem:[#allocation5 + $0xcc] sm:$0xf]
    %v900 = vld [vmem:[#allocation5 + $0xd0] sm:$0xf]
    %v901 = vld [vmem:[#allocation5 + $0xd4] sm:$0xf]
    %v902 = vld [vmem:[#allocation5 + $0xd8] sm:$0xf]
    %v903 = vld [vmem:[#allocation5 + $0xdc] sm:$0xf]
    %v904 = vld [vmem:[#allocation7 + $0x98] sm:$0x1]
    %v905 = vld [vmem:[#allocation7 + $0x99] sm:$0x1]
    %v906 = vld [vmem:[#allocation7 + $0x9a] sm:$0x1]
    %v907 = vld [vmem:[#allocation7 + $0x9b] sm:$0x1]
    %v908 = vld [vmem:[#allocation7 + $0x9c] sm:$0x1]
    %v909 = vld [vmem:[#allocation7 + $0x9d] sm:$0x1]
    %v910 = vld [vmem:[#allocation7 + $0x9e] sm:$0x1]
    %v911 = vld [vmem:[#allocation7 + $0x9f] sm:$0x1]
    %v912 = vld [vmem:[#allocation7 + $0xa0] sm:$0x1]
    %v913 = vld [vmem:[#allocation7 + $0xa1] sm:$0x1]
    %v914 = vpack.c.bf16 %v875, %v874
    %v915 = vlaneseq
    %v916 = vshrl.u32 %v915, 7
    %v917 = vsub.s32 0, %v916
    %v918 = vrot.slane %v904, %v917
    %v923 = vunpack.c.l.b16 %v876
    %v924 = vunpack.c.l.b16 %v877
    %v925 = vunpack.c.l.b16 %v878
    %v926 = vunpack.c.l.b16 %v879
    %v927 = vpack.c.b16 %v924, %v923
    %v928 = vpack.c.b16 %v926, %v925
    %v932 = vsel %vm130, %v914, 0
    %934 = vmatprep.subr.bf16.mxu0 0
    %935 = vmatpush1.bf16.msra.mxu0 %v927
    %936 = vmatprep.subr.bf16.mxu0 0
    %937 = vmatpush1.bf16.msra.mxu0 %v928
    %938 = vmatprep.subr.bf16.mxu0 0
    %939 = vmatpush1.bf16.msra.mxu0 0
    %940 = vmatprep.subr.bf16.mxu0 0
    %941 = vmatpush1.bf16.msra.mxu0 0
    %942 = vmatprep.subr.bf16.mxu0 0
    %943 = vmatpush1.bf16.msra.mxu0 0
    %944 = vmatprep.subr.bf16.mxu0 0
    %945 = vmatpush1.bf16.msra.mxu0 0
    %946 = vmatprep.subr.bf16.mxu0 0
    %947 = vmatpush1.bf16.msra.mxu0 0
    %948 = vmatprep.subr.bf16.mxu0 0
    %949 = vmatpush1.bf16.msra.mxu0 0
    %950 = vmatprep.subr.bf16.mxu0 0
    %951 = vmatpush1.bf16.msra.mxu0 0
    %952 = vmatprep.subr.bf16.mxu0 0
    %953 = vmatpush1.bf16.msra.mxu0 0
    %954 = vmatprep.subr.bf16.mxu0 0
    %955 = vmatpush1.bf16.msra.mxu0 0
    %956 = vmatprep.subr.bf16.mxu0 0
    %957 = vmatpush1.bf16.msra.mxu0 0
    %958 = vmatprep.subr.bf16.mxu0 0
    %959 = vmatpush1.bf16.msra.mxu0 0
    %960 = vmatprep.subr.bf16.mxu0 0
    %961 = vmatpush1.bf16.msra.mxu0 0
    %962 = vmatprep.subr.bf16.mxu0 0
    %963 = vmatpush1.bf16.msra.mxu0 0
    %964 = vmatprep.subr.bf16.mxu0 0
    %965 = vmatpush1.bf16.msra.mxu0 0
    %966 = vmatprep.mubr.bf16.mxu0 0
    %967 = vmatmul.mubr.bf16.gmra.mrb[0].mxu0 %v932
    %v968 = vpop.f32.mrb[0].mxu0
    %v969 = vadd.f32 %v918, %v968
    %v970 = vpop.f32.mrb[0].mxu0
    %v971 = vpop.f32.mrb[0].mxu0
    %v972 = vadd.f32 %v918, %v971
    %v973 = vpop.f32.mrb[0].mxu0
    %974 = vdwg.mxu0
    %v975 = vlaneseq
    %v976 = vshrl.u32 %v975, 7
    %v977 = vsub.s32 0, %v976
    %v978 = vrot.slane %v905, %v977
    %v983 = vunpack.c.l.b16 %v880
    %v984 = vunpack.c.l.b16 %v881
    %v985 = vunpack.c.l.b16 %v882
    %v986 = vunpack.c.l.b16 %v883
    %v987 = vpack.c.b16 %v984, %v983
    %v988 = vpack.c.b16 %v986, %v985
    %991 = vmatprep.subr.bf16.mxu0 0
    %992 = vmatpush1.bf16.msra.mxu0 %v987
    %993 = vmatprep.subr.bf16.mxu0 0
    %994 = vmatpush1.bf16.msra.mxu0 %v988
    %995 = vmatprep.subr.bf16.mxu0 0
    %996 = vmatpush1.bf16.msra.mxu0 0
    %997 = vmatprep.subr.bf16.mxu0 0
    %998 = vmatpush1.bf16.msra.mxu0 0
    %999 = vmatprep.subr.bf16.mxu0 0
    %1000 = vmatpush1.bf16.msra.mxu0 0
    %1001 = vmatprep.subr.bf16.mxu0 0
    %1002 = vmatpush1.bf16.msra.mxu0 0
    %1003 = vmatprep.subr.bf16.mxu0 0
    %1004 = vmatpush1.bf16.msra.mxu0 0
    %1005 = vmatprep.subr.bf16.mxu0 0
    %1006 = vmatpush1.bf16.msra.mxu0 0
    %1007 = vmatprep.subr.bf16.mxu0 0
    %1008 = vmatpush1.bf16.msra.mxu0 0
    %1009 = vmatprep.subr.bf16.mxu0 0
    %1010 = vmatpush1.bf16.msra.mxu0 0
    %1011 = vmatprep.subr.bf16.mxu0 0
    %1012 = vmatpush1.bf16.msra.mxu0 0
    %1013 = vmatprep.subr.bf16.mxu0 0
    %1014 = vmatpush1.bf16.msra.mxu0 0
    %1015 = vmatprep.subr.bf16.mxu0 0
    %1016 = vmatpush1.bf16.msra.mxu0 0
    %1017 = vmatprep.subr.bf16.mxu0 0
    %1018 = vmatpush1.bf16.msra.mxu0 0
    %1019 = vmatprep.subr.bf16.mxu0 0
    %1020 = vmatpush1.bf16.msra.mxu0 0
    %1021 = vmatprep.subr.bf16.mxu0 0
    %1022 = vmatpush1.bf16.msra.mxu0 0
    %1023 = vmatprep.mubr.bf16.mxu0 0
    %1024 = vmatmul.mubr.bf16.gmra.mrb[0].mxu0 %v932
    %v1025 = vpop.f32.mrb[0].mxu0
    %v1026 = vadd.f32 %v978, %v1025
    %v1027 = vpop.f32.mrb[0].mxu0
    %v1028 = vpop.f32.mrb[0].mxu0
    %v1029 = vadd.f32 %v978, %v1028
    %v1030 = vpop.f32.mrb[0].mxu0
    %1031 = vdwg.mxu0
    %v1032 = vlaneseq
    %v1033 = vshrl.u32 %v1032, 7
    %v1034 = vsub.s32 0, %v1033
    %v1035 = vrot.slane %v906, %v1034
    %v1040 = vunpack.c.l.b16 %v884
    %v1041 = vunpack.c.l.b16 %v885
    %v1042 = vunpack.c.l.b16 %v886
    %v1043 = vunpack.c.l.b16 %v887
    %v1044 = vpack.c.b16 %v1041, %v1040
    %v1045 = vpack.c.b16 %v1043, %v1042
    %1048 = vmatprep.subr.bf16.mxu0 0
    %1049 = vmatpush1.bf16.msra.mxu0 %v1044
    %1050 = vmatprep.subr.bf16.mxu0 0
    %1051 = vmatpush1.bf16.msra.mxu0 %v1045
    %1052 = vmatprep.subr.bf16.mxu0 0
    %1053 = vmatpush1.bf16.msra.mxu0 0
    %1054 = vmatprep.subr.bf16.mxu0 0
    %1055 = vmatpush1.bf16.msra.mxu0 0
    %1056 = vmatprep.subr.bf16.mxu0 0
    %1057 = vmatpush1.bf16.msra.mxu0 0
    %1058 = vmatprep.subr.bf16.mxu0 0
    %1059 = vmatpush1.bf16.msra.mxu0 0
    %1060 = vmatprep.subr.bf16.mxu0 0
    %1061 = vmatpush1.bf16.msra.mxu0 0
    %1062 = vmatprep.subr.bf16.mxu0 0
    %1063 = vmatpush1.bf16.msra.mxu0 0
    %1064 = vmatprep.subr.bf16.mxu0 0
    %1065 = vmatpush1.bf16.msra.mxu0 0
    %1066 = vmatprep.subr.bf16.mxu0 0
    %1067 = vmatpush1.bf16.msra.mxu0 0
    %1068 = vmatprep.subr.bf16.mxu0 0
    %1069 = vmatpush1.bf16.msra.mxu0 0
    %1070 = vmatprep.subr.bf16.mxu0 0
    %1071 = vmatpush1.bf16.msra.mxu0 0
    %1072 = vmatprep.subr.bf16.mxu0 0
    %1073 = vmatpush1.bf16.msra.mxu0 0
    %1074 = vmatprep.subr.bf16.mxu0 0
    %1075 = vmatpush1.bf16.msra.mxu0 0
    %1076 = vmatprep.subr.bf16.mxu0 0
    %1077 = vmatpush1.bf16.msra.mxu0 0
    %1078 = vmatprep.subr.bf16.mxu0 0
    %1079 = vmatpush1.bf16.msra.mxu0 0
    %1080 = vmatprep.mubr.bf16.mxu0 0
    %1081 = vmatmul.mubr.bf16.gmra.mrb[0].mxu0 %v932
    %v1082 = vpop.f32.mrb[0].mxu0
    %v1083 = vadd.f32 %v1035, %v1082
    %v1084 = vpop.f32.mrb[0].mxu0
    %v1085 = vpop.f32.mrb[0].mxu0
    %v1086 = vadd.f32 %v1035, %v1085
    %v1087 = vpop.f32.mrb[0].mxu0
    %1088 = vdwg.mxu0
    %v1089 = vmul.f32 %v969, %v67
    %v1090 = vmul.f32 %v972, %v68
    %v1091 = vmul.f32 %v969, %v69
    %v1092 = vmul.f32 %v972, %v70
    %v1093 = vmul.f32 %v969, %v71
    %v1094 = vmul.f32 %v972, %v72
    %v1095 = vmul.f32 %v969, %v73
    %v1096 = vmul.f32 %v972, %v74
    %1097 = vxpose.xlu0.b32.start [1/16] %v1026, 128
    %1098 = vxpose.xlu0.b32.cont [2/16] %v1029, 128
    %1099 = vxpose.xlu0.b32.cont [3/16] 0.0, 128
    %1100 = vxpose.xlu0.b32.cont [4/16] 0.0, 128
    %1101 = vxpose.xlu0.b32.cont [5/16] 0.0, 128
    %1102 = vxpose.xlu0.b32.cont [6/16] 0.0, 128
    %1103 = vxpose.xlu0.b32.cont [7/16] 0.0, 128
    %1104 = vxpose.xlu0.b32.cont [8/16] 0.0, 128
    %1105 = vxpose.xlu0.b32.cont [9/16] 0.0, 128
    %1106 = vxpose.xlu0.b32.cont [10/16] 0.0, 128
    %1107 = vxpose.xlu0.b32.cont [11/16] 0.0, 128
    %1108 = vxpose.xlu0.b32.cont [12/16] 0.0, 128
    %1109 = vxpose.xlu0.b32.cont [13/16] 0.0, 128
    %1110 = vxpose.xlu0.b32.cont [14/16] 0.0, 128
    %1111 = vxpose.xlu0.b32.cont [15/16] 0.0, 128
    %1112 = vxpose.xlu0.b32.end [16/16] 0.0, 128
    %v1113 = vpop.trf.xlu0
    %v1114 = vpop.trf.xlu0
    %v1115 = vpop.trf.xlu0
    %v1116 = vpop.trf.xlu0
    %v1117 = vpop.trf.xlu0
    %v1118 = vpop.trf.xlu0
    %v1119 = vpop.trf.xlu0
    %v1120 = vpop.trf.xlu0
    %v1121 = vpop.trf.xlu0
    %v1122 = vpop.trf.xlu0
    %v1123 = vpop.trf.xlu0
    %v1124 = vpop.trf.xlu0
    %v1125 = vpop.trf.xlu0
    %v1126 = vpop.trf.xlu0
    %v1127 = vpop.trf.xlu0
    %v1128 = vpop.trf.xlu0
    %v1129 = vpack.c.bf16 %v1090, %v1089
    %v1130 = vpack.c.bf16 %v1092, %v1091
    %v1131 = vpack.c.bf16 %v1094, %v1093
    %v1132 = vpack.c.bf16 %v1096, %v1095
    %v1133 = vpack.c.bf16 %v1114, %v1113
    %v1134 = vpack.c.bf16 %v1116, %v1115
    %v1136 = vsel %vm130, %v1129, 0
    %v1139 = vsel %vm130, %v1130, 0
    %v1142 = vsel %vm130, %v1131, 0
    %v1145 = vsel %vm130, %v1132, 0
    %1147 = vmatprep.subr.bf16.mxu0 0
    %1148 = vmatpush1.bf16.msra.mxu0 %v1133
    %1149 = vmatprep.subr.bf16.mxu0 0
    %1150 = vmatpush1.bf16.msra.mxu0 %v1134
    %1151 = vmatprep.subr.bf16.mxu0 0
    %1152 = vmatpush1.bf16.msra.mxu0 0
    %1153 = vmatprep.subr.bf16.mxu0 0
    %1154 = vmatpush1.bf16.msra.mxu0 0
    %1155 = vmatprep.subr.bf16.mxu0 0
    %1156 = vmatpush1.bf16.msra.mxu0 0
    %1157 = vmatprep.subr.bf16.mxu0 0
    %1158 = vmatpush1.bf16.msra.mxu0 0
    %1159 = vmatprep.subr.bf16.mxu0 0
    %1160 = vmatpush1.bf16.msra.mxu0 0
    %1161 = vmatprep.subr.bf16.mxu0 0
    %1162 = vmatpush1.bf16.msra.mxu0 0
    %1163 = vmatprep.subr.bf16.mxu0 0
    %1164 = vmatpush1.bf16.msra.mxu0 0
    %1165 = vmatprep.subr.bf16.mxu0 0
    %1166 = vmatpush1.bf16.msra.mxu0 0
    %1167 = vmatprep.subr.bf16.mxu0 0
    %1168 = vmatpush1.bf16.msra.mxu0 0
    %1169 = vmatprep.subr.bf16.mxu0 0
    %1170 = vmatpush1.bf16.msra.mxu0 0
    %1171 = vmatprep.subr.bf16.mxu0 0
    %1172 = vmatpush1.bf16.msra.mxu0 0
    %1173 = vmatprep.subr.bf16.mxu0 0
    %1174 = vmatpush1.bf16.msra.mxu0 0
    %1175 = vmatprep.subr.bf16.mxu0 0
    %1176 = vmatpush1.bf16.msra.mxu0 0
    %1177 = vmatprep.subr.bf16.mxu0 0
    %1178 = vmatpush1.bf16.msra.mxu0 0
    %1179 = vmatprep.mubr.bf16.mxu0 0
    %1180 = vmatmul.mubr.bf16.gmra.mrb[0].mxu0 %v1136
    %v1181 = vpop.f32.mrb[0].mxu0
    %v1182 = vadd.f32 %v59, %v1181
    %v1183 = vpop.f32.mrb[0].mxu0
    %v1184 = vpop.f32.mrb[0].mxu0
    %v1185 = vadd.f32 %v60, %v1184
    %v1186 = vpop.f32.mrb[0].mxu0
    %1187 = vmatprep.mubr.bf16.mxu0 0
    %1188 = vmatmul.mubr.bf16.gmra.mrb[0].mxu0 %v1139
    %v1189 = vpop.f32.mrb[0].mxu0
    %v1190 = vadd.f32 %v61, %v1189
    %v1191 = vpop.f32.mrb[0].mxu0
    %v1192 = vpop.f32.mrb[0].mxu0
    %v1193 = vadd.f32 %v62, %v1192
    %v1194 = vpop.f32.mrb[0].mxu0
    %1195 = vmatprep.mubr.bf16.mxu0 0
    %1196 = vmatmul.mubr.bf16.gmra.mrb[0].mxu0 %v1142
    %v1197 = vpop.f32.mrb[0].mxu0
    %v1198 = vadd.f32 %v63, %v1197
    %v1199 = vpop.f32.mrb[0].mxu0
    %v1200 = vpop.f32.mrb[0].mxu0
    %v1201 = vadd.f32 %v64, %v1200
    %v1202 = vpop.f32.mrb[0].mxu0
    %1203 = vmatprep.mubr.bf16.mxu0 0
    %1204 = vmatmul.mubr.bf16.gmra.mrb[0].mxu0 %v1145
    %v1205 = vpop.f32.mrb[0].mxu0
    %v1206 = vadd.f32 %v65, %v1205
    %v1207 = vpop.f32.mrb[0].mxu0
    %v1208 = vpop.f32.mrb[0].mxu0
    %v1209 = vadd.f32 %v66, %v1208
    %v1210 = vpop.f32.mrb[0].mxu0
    %1211 = vdwg.mxu0
    %v1212 = vsel %vm412, %v1182, -inf
    %1213 = vmax.xlane.f32.xlu0 %v1212
    %v1214 = vpop.xlane.xlu0 %1213
    %v1215 = vsel %vm412, %v1185, -inf
    %1216 = vmax.xlane.f32.xlu0 %v1215
    %v1217 = vpop.xlane.xlu0 %1216
    %v1218 = vsel %vm412, %v1190, -inf
    %1219 = vmax.xlane.f32.xlu0 %v1218
    %v1220 = vpop.xlane.xlu0 %1219
    %v1221 = vsel %vm412, %v1193, -inf
    %1222 = vmax.xlane.f32.xlu0 %v1221
    %v1223 = vpop.xlane.xlu0 %1222
    %v1224 = vsel %vm412, %v1198, -inf
    %1225 = vmax.xlane.f32.xlu0 %v1224
    %v1226 = vpop.xlane.xlu0 %1225
    %v1227 = vsel %vm412, %v1201, -inf
    %1228 = vmax.xlane.f32.xlu0 %v1227
    %v1229 = vpop.xlane.xlu0 %1228
    %v1230 = vsel %vm412, %v1206, -inf
    %1231 = vmax.xlane.f32.xlu0 %v1230
    %v1232 = vpop.xlane.xlu0 %1231
    %v1233 = vsel %vm412, %v1209, -inf
    %1234 = vmax.xlane.f32.xlu0 %v1233
    %v1235 = vpop.xlane.xlu0 %1234
    %v1236 = vsub.f32 %v1182, %v1214
    %v1237 = vsub.f32 %v1185, %v1217
    %v1238 = vsub.f32 %v1190, %v1220
    %v1239 = vsub.f32 %v1193, %v1223
    %v1240 = vsub.f32 %v1198, %v1226
    %v1241 = vsub.f32 %v1201, %v1229
    %v1242 = vsub.f32 %v1206, %v1232
    %v1243 = vsub.f32 %v1209, %v1235
    %v1244 = vmul.f32 %v1236, 1.442695
    %v1245 = vpow.pop %v1244
    %v1246 = vmul.f32 %v1237, 1.442695
    %v1247 = vpow.pop %v1246
    %v1248 = vmul.f32 %v1238, 1.442695
    %v1249 = vpow.pop %v1248
    %v1250 = vmul.f32 %v1239, 1.442695
    %v1251 = vpow.pop %v1250
    %v1252 = vmul.f32 %v1240, 1.442695
    %v1253 = vpow.pop %v1252
    %v1254 = vmul.f32 %v1241, 1.442695
    %v1255 = vpow.pop %v1254
    %v1256 = vmul.f32 %v1242, 1.442695
    %v1257 = vpow.pop %v1256
    %v1258 = vmul.f32 %v1243, 1.442695
    %v1259 = vpow.pop %v1258
    %v1260 = vsel %vm412, %v1245, 0.0
    %1261 = vadd.xlane.f32.xlu0 %v1260
    %v1262 = vpop.xlane.xlu0 %1261
    %v1263 = vsel %vm412, %v1247, 0.0
    %1264 = vadd.xlane.f32.xlu0 %v1263
    %v1265 = vpop.xlane.xlu0 %1264
    %v1266 = vsel %vm412, %v1249, 0.0
    %1267 = vadd.xlane.f32.xlu0 %v1266
    %v1268 = vpop.xlane.xlu0 %1267
    %v1269 = vsel %vm412, %v1251, 0.0
    %1270 = vadd.xlane.f32.xlu0 %v1269
    %v1271 = vpop.xlane.xlu0 %1270
    %v1272 = vsel %vm412, %v1253, 0.0
    %1273 = vadd.xlane.f32.xlu0 %v1272
    %v1274 = vpop.xlane.xlu0 %1273
    %v1275 = vsel %vm412, %v1255, 0.0
    %1276 = vadd.xlane.f32.xlu0 %v1275
    %v1277 = vpop.xlane.xlu0 %1276
    %v1278 = vsel %vm412, %v1257, 0.0
    %1279 = vadd.xlane.f32.xlu0 %v1278
    %v1280 = vpop.xlane.xlu0 %1279
    %v1281 = vsel %vm412, %v1259, 0.0
    %1282 = vadd.xlane.f32.xlu0 %v1281
    %v1283 = vpop.xlane.xlu0 %1282
    %v1284 = vrcp.pop %v1262
    %v1285 = vrcp.pop %v1265
    %v1286 = vrcp.pop %v1268
    %v1287 = vrcp.pop %v1271
    %v1288 = vrcp.pop %v1274
    %v1289 = vrcp.pop %v1277
    %v1290 = vrcp.pop %v1280
    %v1291 = vrcp.pop %v1283
    %v1292 = vmul.f32 %v1245, %v1284
    %v1293 = vmul.f32 %v1247, %v1285
    %v1294 = vmul.f32 %v1249, %v1286
    %v1295 = vmul.f32 %v1251, %v1287
    %v1296 = vmul.f32 %v1253, %v1288
    %v1297 = vmul.f32 %v1255, %v1289
    %v1298 = vmul.f32 %v1257, %v1290
    %v1299 = vmul.f32 %v1259, %v1291
    %v1300 = vpack.c.bf16 %v1293, %v1292
    %v1301 = vpack.c.bf16 %v1295, %v1294
    %v1302 = vpack.c.bf16 %v1297, %v1296
    %v1303 = vpack.c.bf16 %v1299, %v1298
    %v1304 = vpack.c.bf16 %v1086, %v1083
    %v1306 = vsel %vm412, %v1300, 0
    %v1309 = vsel %vm412, %v1301, 0
    %v1312 = vsel %vm412, %v1302, 0
    %v1315 = vsel %vm412, %v1303, 0
    %1317 = vmatprep.subr.bf16.mxu0 0
    %1318 = vmatpush1.bf16.msra.mxu0 %v1304
    %1319 = vmatprep.subr.bf16.mxu0 0
    %1320 = vmatpush1.bf16.msra.mxu0 0
    %1321 = vmatprep.subr.bf16.mxu0 0
    %1322 = vmatpush1.bf16.msra.mxu0 0
    %1323 = vmatprep.subr.bf16.mxu0 0
    %1324 = vmatpush1.bf16.msra.mxu0 0
    %1325 = vmatprep.subr.bf16.mxu0 0
    %1326 = vmatpush1.bf16.msra.mxu0 0
    %1327 = vmatprep.subr.bf16.mxu0 0
    %1328 = vmatpush1.bf16.msra.mxu0 0
    %1329 = vmatprep.subr.bf16.mxu0 0
    %1330 = vmatpush1.bf16.msra.mxu0 0
    %1331 = vmatprep.subr.bf16.mxu0 0
    %1332 = vmatpush1.bf16.msra.mxu0 0
    %1333 = vmatprep.subr.bf16.mxu0 0
    %1334 = vmatpush1.bf16.msra.mxu0 0
    %1335 = vmatprep.subr.bf16.mxu0 0
    %1336 = vmatpush1.bf16.msra.mxu0 0
    %1337 = vmatprep.subr.bf16.mxu0 0
    %1338 = vmatpush1.bf16.msra.mxu0 0
    %1339 = vmatprep.subr.bf16.mxu0 0
    %1340 = vmatpush1.bf16.msra.mxu0 0
    %1341 = vmatprep.subr.bf16.mxu0 0
    %1342 = vmatpush1.bf16.msra.mxu0 0
    %1343 = vmatprep.subr.bf16.mxu0 0
    %1344 = vmatpush1.bf16.msra.mxu0 0
    %1345 = vmatprep.subr.bf16.mxu0 0
    %1346 = vmatpush1.bf16.msra.mxu0 0
    %1347 = vmatprep.subr.bf16.mxu0 0
    %1348 = vmatpush1.bf16.msra.mxu0 0
    %1349 = vmatprep.mubr.bf16.mxu0 0
    %1350 = vmatmul.mubr.bf16.gmra.mrb[0].mxu0 %v1306
    %v1351 = vpop.f32.mrb[0].mxu0
    %v1352 = vadd.f32 0.0, %v1351
    %v1353 = vpop.f32.mrb[0].mxu0
    %v1354 = vpop.f32.mrb[0].mxu0
    %v1355 = vadd.f32 0.0, %v1354
    %v1356 = vpop.f32.mrb[0].mxu0
    %1357 = vmatprep.mubr.bf16.mxu0 0
    %1358 = vmatmul.mubr.bf16.gmra.mrb[0].mxu0 %v1309
    %v1359 = vpop.f32.mrb[0].mxu0
    %v1360 = vadd.f32 0.0, %v1359
    %v1361 = vpop.f32.mrb[0].mxu0
    %v1362 = vpop.f32.mrb[0].mxu0
    %v1363 = vadd.f32 0.0, %v1362
    %v1364 = vpop.f32.mrb[0].mxu0
    %1365 = vmatprep.mubr.bf16.mxu0 0
    %1366 = vmatmul.mubr.bf16.gmra.mrb[0].mxu0 %v1312
    %v1367 = vpop.f32.mrb[0].mxu0
    %v1368 = vadd.f32 0.0, %v1367
    %v1369 = vpop.f32.mrb[0].mxu0
    %v1370 = vpop.f32.mrb[0].mxu0
    %v1371 = vadd.f32 0.0, %v1370
    %v1372 = vpop.f32.mrb[0].mxu0
    %1373 = vmatprep.mubr.bf16.mxu0 0
    %1374 = vmatmul.mubr.bf16.gmra.mrb[0].mxu0 %v1315
    %v1375 = vpop.f32.mrb[0].mxu0
    %v1376 = vadd.f32 0.0, %v1375
    %v1377 = vpop.f32.mrb[0].mxu0
    %v1378 = vpop.f32.mrb[0].mxu0
    %v1379 = vadd.f32 0.0, %v1378
    %v1380 = vpop.f32.mrb[0].mxu0
    %1381 = vdwg.mxu0
    %v1382 = vmul.f32 %v1352, %v67
    %v1383 = vmul.f32 %v1355, %v68
    %v1384 = vmul.f32 %v1360, %v69
    %v1385 = vmul.f32 %v1363, %v70
    %v1386 = vmul.f32 %v1368, %v71
    %v1387 = vmul.f32 %v1371, %v72
    %v1388 = vmul.f32 %v1376, %v73
    %v1389 = vmul.f32 %v1379, %v74
    %v1390 = vadd.f32 %v1382, %v1384
    %v1391 = vadd.f32 %v1383, %v1385
    %v1392 = vadd.f32 %v1390, %v1386
    %v1393 = vadd.f32 %v1391, %v1387
    %v1394 = vadd.f32 %v1392, %v1388
    %v1395 = vadd.f32 %v1393, %v1389
    %v1396 = vpack.c.bf16 %v1395, %v1394
    %v1397 = vlaneseq
    %v1398 = vshrl.u32 %v1397, 7
    %v1399 = vsub.s32 0, %v1398
    %v1400 = vrot.slane %v907, %v1399
    %v1405 = vunpack.c.l.b16 %v888
    %v1406 = vunpack.c.l.b16 %v889
    %v1407 = vunpack.c.l.b16 %v890
    %v1408 = vunpack.c.l.b16 %v891
    %v1409 = vpack.c.b16 %v1406, %v1405
    %v1410 = vpack.c.b16 %v1408, %v1407
    %v1414 = vsel %vm130, %v1396, 0
    %1416 = vmatprep.subr.bf16.mxu0 0
    %1417 = vmatpush1.bf16.msra.mxu0 %v1409
    %1418 = vmatprep.subr.bf16.mxu0 0
    %1419 = vmatpush1.bf16.msra.mxu0 %v1410
    %1420 = vmatprep.subr.bf16.mxu0 0
    %1421 = vmatpush1.bf16.msra.mxu0 0
    %1422 = vmatprep.subr.bf16.mxu0 0
    %1423 = vmatpush1.bf16.msra.mxu0 0
    %1424 = vmatprep.subr.bf16.mxu0 0
    %1425 = vmatpush1.bf16.msra.mxu0 0
    %1426 = vmatprep.subr.bf16.mxu0 0
    %1427 = vmatpush1.bf16.msra.mxu0 0
    %1428 = vmatprep.subr.bf16.mxu0 0
    %1429 = vmatpush1.bf16.msra.mxu0 0
    %1430 = vmatprep.subr.bf16.mxu0 0
    %1431 = vmatpush1.bf16.msra.mxu0 0
    %1432 = vmatprep.subr.bf16.mxu0 0
    %1433 = vmatpush1.bf16.msra.mxu0 0
    %1434 = vmatprep.subr.bf16.mxu0 0
    %1435 = vmatpush1.bf16.msra.mxu0 0
    %1436 = vmatprep.subr.bf16.mxu0 0
    %1437 = vmatpush1.bf16.msra.mxu0 0
    %1438 = vmatprep.subr.bf16.mxu0 0
    %1439 = vmatpush1.bf16.msra.mxu0 0
    %1440 = vmatprep.subr.bf16.mxu0 0
    %1441 = vmatpush1.bf16.msra.mxu0 0
    %1442 = vmatprep.subr.bf16.mxu0 0
    %1443 = vmatpush1.bf16.msra.mxu0 0
    %1444 = vmatprep.subr.bf16.mxu0 0
    %1445 = vmatpush1.bf16.msra.mxu0 0
    %1446 = vmatprep.subr.bf16.mxu0 0
    %1447 = vmatpush1.bf16.msra.mxu0 0
    %1448 = vmatprep.mubr.bf16.mxu0 0
    %1449 = vmatmul.mubr.bf16.gmra.mrb[0].mxu0 %v1414
    %v1450 = vpop.f32.mrb[0].mxu0
    %v1451 = vadd.f32 %v1400, %v1450
    %v1452 = vpop.f32.mrb[0].mxu0
    %v1453 = vpop.f32.mrb[0].mxu0
    %v1454 = vadd.f32 %v1400, %v1453
    %v1455 = vpop.f32.mrb[0].mxu0
    %1456 = vdwg.mxu0
    %v1457 = vadd.f32 %v874, %v1451
    %v1458 = vadd.f32 %v875, %v1454
    %v1459 = vsel %vm130, %v1457, 0.0
    %1460 = vadd.xlane.f32.xlu0 %v1459
    %v1461 = vpop.xlane.xlu0 %1460
    %v1462 = vsel %vm130, %v1458, 0.0
    %1463 = vadd.xlane.f32.xlu0 %v1462
    %v1464 = vpop.xlane.xlu0 %1463
    %v1465 = vmul.f32 %v1461, %v666
    %v1466 = vmul.f32 %v1464, %v666
    %v1467 = vsub.f32 %v1457, %v1465
    %v1468 = vsub.f32 %v1458, %v1466
    %v1469 = vmul.f32 %v1467, %v1467
    %v1470 = vmul.f32 %v1468, %v1468
    %v1471 = vsel %vm130, %v1469, 0.0
    %1472 = vadd.xlane.f32.xlu0 %v1471
    %v1473 = vpop.xlane.xlu0 %1472
    %v1474 = vsel %vm130, %v1470, 0.0
    %1475 = vadd.xlane.f32.xlu0 %v1474
    %v1476 = vpop.xlane.xlu0 %1475
    %v1477 = vmul.f32 %v1473, %v666
    %v1478 = vmul.f32 %v1476, %v666
    %v1479 = vadd.f32 %v1477, 1e-05
    %v1480 = vadd.f32 %v1478, 1e-05
    %v1481 = vrsqrt.pop %v1479
    %v1482 = vrsqrt.pop %v1480
    %v1483 = vmul.f32 %v1467, %v1481
    %v1484 = vmul.f32 %v1468, %v1482
    %v1485 = vlaneseq
    %v1486 = vshrl.u32 %v1485, 7
    %v1487 = vsub.s32 0, %v1486
    %v1488 = vrot.slane %v910, %v1487
    %v1489 = vmul.f32 %v1483, %v1488
    %v1490 = vmul.f32 %v1484, %v1488
    %v1491 = vlaneseq
    %v1492 = vshrl.u32 %v1491, 7
    %v1493 = vsub.s32 0, %v1492
    %v1494 = vrot.slane %v911, %v1493
    %v1495 = vadd.f32 %v1489, %v1494
    %v1496 = vadd.f32 %v1490, %v1494
    %v1497 = vpack.c.bf16 %v1496, %v1495
    %v1498 = vlaneseq
    %v1499 = vshrl.u32 %v1498, 7
    %v1500 = vsub.s32 0, %v1499
    %v1501 = vrot.slane %v908, %v1500
    %v1506 = vunpack.c.l.b16 %v892
    %v1507 = vunpack.c.l.b16 %v893
    %v1508 = vunpack.c.l.b16 %v894
    %v1509 = vunpack.c.l.b16 %v895
    %v1510 = vpack.c.b16 %v1507, %v1506
    %v1511 = vpack.c.b16 %v1509, %v1508
    %v1515 = vsel %vm130, %v1497, 0
    %1517 = vmatprep.subr.bf16.mxu0 0
    %1518 = vmatpush1.bf16.msra.mxu0 %v1510
    %1519 = vmatprep.subr.bf16.mxu0 0
    %1520 = vmatpush1.bf16.msra.mxu0 %v1511
    %1521 = vmatprep.subr.bf16.mxu0 0
    %1522 = vmatpush1.bf16.msra.mxu0 0
    %1523 = vmatprep.subr.bf16.mxu0 0
    %1524 = vmatpush1.bf16.msra.mxu0 0
    %1525 = vmatprep.subr.bf16.mxu0 0
    %1526 = vmatpush1.bf16.msra.mxu0 0
    %1527 = vmatprep.subr.bf16.mxu0 0
    %1528 = vmatpush1.bf16.msra.mxu0 0
    %1529 = vmatprep.subr.bf16.mxu0 0
    %1530 = vmatpush1.bf16.msra.mxu0 0
    %1531 = vmatprep.subr.bf16.mxu0 0
    %1532 = vmatpush1.bf16.msra.mxu0 0
    %1533 = vmatprep.subr.bf16.mxu0 0
    %1534 = vmatpush1.bf16.msra.mxu0 0
    %1535 = vmatprep.subr.bf16.mxu0 0
    %1536 = vmatpush1.bf16.msra.mxu0 0
    %1537 = vmatprep.subr.bf16.mxu0 0
    %1538 = vmatpush1.bf16.msra.mxu0 0
    %1539 = vmatprep.subr.bf16.mxu0 0
    %1540 = vmatpush1.bf16.msra.mxu0 0
    %1541 = vmatprep.subr.bf16.mxu0 0
    %1542 = vmatpush1.bf16.msra.mxu0 0
    %1543 = vmatprep.subr.bf16.mxu0 0
    %1544 = vmatpush1.bf16.msra.mxu0 0
    %1545 = vmatprep.subr.bf16.mxu0 0
    %1546 = vmatpush1.bf16.msra.mxu0 0
    %1547 = vmatprep.subr.bf16.mxu0 0
    %1548 = vmatpush1.bf16.msra.mxu0 0
    %1549 = vmatprep.mubr.bf16.mxu0 0
    %1550 = vmatmul.mubr.bf16.gmra.mrb[0].mxu0 %v1515
    %v1551 = vpop.f32.mrb[0].mxu0
    %v1552 = vadd.f32 %v1501, %v1551
    %v1553 = vpop.f32.mrb[0].mxu0
    %v1554 = vpop.f32.mrb[0].mxu0
    %v1555 = vadd.f32 %v1501, %v1554
    %v1556 = vpop.f32.mrb[0].mxu0
    %1557 = vdwg.mxu0
    %v1558 = vmax.f32 %v1552, 0.0
    %v1559 = vmax.f32 %v1555, 0.0
    %v1560 = vpack.c.bf16 %v1559, %v1558
    %v1561 = vlaneseq
    %v1562 = vshrl.u32 %v1561, 7
    %v1563 = vsub.s32 0, %v1562
    %v1564 = vrot.slane %v909, %v1563
    %v1573 = vunpack.c.l.b16 %v896
    %v1574 = vunpack.c.l.b16 %v897
    %v1575 = vunpack.c.l.b16 %v898
    %v1576 = vunpack.c.l.b16 %v899
    %v1577 = vunpack.c.l.b16 %v900
    %v1578 = vunpack.c.l.b16 %v901
    %v1579 = vunpack.c.l.b16 %v902
    %v1580 = vunpack.c.l.b16 %v903
    %v1581 = vpack.c.b16 %v1574, %v1573
    %v1582 = vpack.c.b16 %v1576, %v1575
    %v1583 = vpack.c.b16 %v1578, %v1577
    %v1584 = vpack.c.b16 %v1580, %v1579
    %v1590 = vsel %vm791, %v1560, 0
    %1592 = vmatprep.subr.bf16.mxu0 0
    %1593 = vmatpush1.bf16.msra.mxu0 %v1581
    %1594 = vmatprep.subr.bf16.mxu0 0
    %1595 = vmatpush1.bf16.msra.mxu0 %v1582
    %1596 = vmatprep.subr.bf16.mxu0 0
    %1597 = vmatpush1.bf16.msra.mxu0 %v1583
    %1598 = vmatprep.subr.bf16.mxu0 0
    %1599 = vmatpush1.bf16.msra.mxu0 %v1584
    %1600 = vmatprep.subr.bf16.mxu0 0
    %1601 = vmatpush1.bf16.msra.mxu0 0
    %1602 = vmatprep.subr.bf16.mxu0 0
    %1603 = vmatpush1.bf16.msra.mxu0 0
    %1604 = vmatprep.subr.bf16.mxu0 0
    %1605 = vmatpush1.bf16.msra.mxu0 0
    %1606 = vmatprep.subr.bf16.mxu0 0
    %1607 = vmatpush1.bf16.msra.mxu0 0
    %1608 = vmatprep.subr.bf16.mxu0 0
    %1609 = vmatpush1.bf16.msra.mxu0 0
    %1610 = vmatprep.subr.bf16.mxu0 0
    %1611 = vmatpush1.bf16.msra.mxu0 0
    %1612 = vmatprep.subr.bf16.mxu0 0
    %1613 = vmatpush1.bf16.msra.mxu0 0
    %1614 = vmatprep.subr.bf16.mxu0 0
    %1615 = vmatpush1.bf16.msra.mxu0 0
    %1616 = vmatprep.subr.bf16.mxu0 0
    %1617 = vmatpush1.bf16.msra.mxu0 0
    %1618 = vmatprep.subr.bf16.mxu0 0
    %1619 = vmatpush1.bf16.msra.mxu0 0
    %1620 = vmatprep.subr.bf16.mxu0 0
    %1621 = vmatpush1.bf16.msra.mxu0 0
    %1622 = vmatprep.subr.bf16.mxu0 0
    %1623 = vmatpush1.bf16.msra.mxu0 0
    %1624 = vmatprep.mubr.bf16.mxu0 0
    %1625 = vmatmul.mubr.bf16.gmra.mrb[0].mxu0 %v1590
    %v1626 = vpop.f32.mrb[0].mxu0
    %v1627 = vadd.f32 %v1564, %v1626
    %v1628 = vpop.f32.mrb[0].mxu0
    %v1629 = vpop.f32.mrb[0].mxu0
    %v1630 = vadd.f32 %v1564, %v1629
    %v1631 = vpop.f32.mrb[0].mxu0
    %1632 = vdwg.mxu0
    %v1633 = vadd.f32 %v1495, %v1627
    %v1634 = vadd.f32 %v1496, %v1630
    %v1635 = vsel %vm130, %v1633, 0.0
    %1636 = vadd.xlane.f32.xlu0 %v1635
    %v1637 = vpop.xlane.xlu0 %1636
    %v1638 = vsel %vm130, %v1634, 0.0
    %1639 = vadd.xlane.f32.xlu0 %v1638
    %v1640 = vpop.xlane.xlu0 %1639
    %v1641 = vmul.f32 %v1637, %v666
    %v1642 = vmul.f32 %v1640, %v666
    %v1643 = vsub.f32 %v1633, %v1641
    %v1644 = vsub.f32 %v1634, %v1642
    %v1645 = vmul.f32 %v1643, %v1643
    %v1646 = vmul.f32 %v1644, %v1644
    %v1647 = vsel %vm130, %v1645, 0.0
    %1648 = vadd.xlane.f32.xlu0 %v1647
    %v1649 = vpop.xlane.xlu0 %1648
    %v1650 = vsel %vm130, %v1646, 0.0
    %1651 = vadd.xlane.f32.xlu0 %v1650
    %v1652 = vpop.xlane.xlu0 %1651
    %v1653 = vmul.f32 %v1649, %v666
    %v1654 = vmul.f32 %v1652, %v666
    %v1655 = vadd.f32 %v1653, 1e-05
    %v1656 = vadd.f32 %v1654, 1e-05
    %v1657 = vrsqrt.pop %v1655
    %v1658 = vrsqrt.pop %v1656
    %v1659 = vmul.f32 %v1643, %v1657
    %v1660 = vmul.f32 %v1644, %v1658
    %v1661 = vlaneseq
    %v1662 = vshrl.u32 %v1661, 7
    %v1663 = vsub.s32 0, %v1662
    %v1664 = vrot.slane %v912, %v1663
    %v1665 = vmul.f32 %v1659, %v1664
    %v1666 = vmul.f32 %v1660, %v1664
    %v1667 = vlaneseq
    %v1668 = vshrl.u32 %v1667, 7
    %v1669 = vsub.s32 0, %v1668
    %v1670 = vrot.slane %v913, %v1669
    %v1671 = vadd.f32 %v1665, %v1670
    %v1672 = vadd.f32 %v1666, %v1670
    %v1673 = vld [vmem:[#allocation7 + $0x80] sm:$0x1]
    %v1674 = vld [vmem:[#allocation7 + $0x81] sm:$0x1]
    %v1675 = vsel %vm130, %v1671, 0.0
    %1676 = vadd.xlane.f32.xlu0 %v1675
    %v1677 = vpop.xlane.xlu0 %1676
    %v1678 = vsel %vm130, %v1672, 0.0
    %1679 = vadd.xlane.f32.xlu0 %v1678
    %v1680 = vpop.xlane.xlu0 %1679
    %v1681 = vmul.f32 %v1677, %v666
    %v1682 = vmul.f32 %v1680, %v666
    %v1683 = vsub.f32 %v1671, %v1681
    %v1684 = vsub.f32 %v1672, %v1682
    %v1685 = vmul.f32 %v1683, %v1683
    %v1686 = vmul.f32 %v1684, %v1684
    %v1687 = vsel %vm130, %v1685, 0.0
    %1688 = vadd.xlane.f32.xlu0 %v1687
    %v1689 = vpop.xlane.xlu0 %1688
    %v1690 = vsel %vm130, %v1686, 0.0
    %1691 = vadd.xlane.f32.xlu0 %v1690
    %v1692 = vpop.xlane.xlu0 %1691
    %v1693 = vmul.f32 %v1689, %v666
    %v1694 = vmul.f32 %v1692, %v666
    %v1695 = vadd.f32 %v1693, 1e-05
    %v1696 = vadd.f32 %v1694, 1e-05
    %v1697 = vrsqrt.pop %v1695
    %v1698 = vrsqrt.pop %v1696
    %v1699 = vmul.f32 %v1683, %v1697
    %v1700 = vmul.f32 %v1684, %v1698
    %v1701 = vlaneseq
    %v1702 = vshrl.u32 %v1701, 7
    %v1703 = vsub.s32 0, %v1702
    %v1704 = vrot.slane %v1673, %v1703
    %v1705 = vmul.f32 %v1699, %v1704
    %v1706 = vmul.f32 %v1700, %v1704
    %v1707 = vlaneseq
    %v1708 = vshrl.u32 %v1707, 7
    %v1709 = vsub.s32 0, %v1708
    %v1710 = vrot.slane %v1674, %v1709
    %v1711 = vadd.f32 %v1705, %v1710
    %v1712 = vadd.f32 %v1706, %v1710
    %1713 = vst.msk [vmem:[#allocation8] sm:$0xff] %vm130, %v1711
    %1714 = vst.msk [vmem:[#allocation8 + $0x8] sm:$0xff] %vm130, %v1712
    // Predicated region
    $region26: #{encoder_forward.1} parent=1 // pred_check
      _
    $region27: #{encoder_forward.1} parent=1 // pred_check_branch
      %1716 = sbr.rel (0) target = $region29
    $region28: #{encoder_forward.1} parent=1 // pred_region
      %s1718 = ssub.s32 256, 256
      %1719 = vsyncadd [#allocation4], %s1718
      %s1720 = sshll.u32 [#allocation8], 4
      %s1721 = int_to_ptr.vmem [resolvable:$true] %s1720
      %1726 = dma.vmem_to_hbm [thread:$0]  %s1721, 256, %s3, [#allocation4], 128, 128, 8
    $region29: #{encoder_forward.1} parent=1 // pred_fallthru
      _
    // Predicated region
    $region30: #{encoder_forward.1} parent=1 // pred_check
      _
    $region31: #{encoder_forward.1} parent=1 // pred_check_branch
      %1728 = sbr.rel (0) target = $region33
    $region32: #{encoder_forward.1} parent=1 // pred_region
      %1729 = dma.done [#allocation4], 256
    $region33: #{encoder_forward.1} parent=1 // pred_fallthru
      _
    %1730 = vsyncpa [#allocation3], 1
    %1731 = vsyncpa [#allocation6], 1
    %1732 = vsyncpa [#allocation4], 1

</llo_original>
